<compile_context>
chip_gen: v5e
topology: v5e:2x2
jax: 0.10.0
libtpu: 0.0.40
codegen_flags: <defaults>
</compile_context>

<pallas_src>
import jax
import jax.numpy as jnp
from jax import lax
from jax.experimental import pallas as pl
from jax.experimental.pallas import tpu as pltpu

# ----------------------------- small config ---------------------------------
BATCH = 2
BATCH_TILE = 2                # whole batch per grid step at this toy size
SEQ = 8
HIDDEN = 32
NUM_HEADS = 2
HEAD_DIM = HIDDEN // NUM_HEADS
INTERMEDIATE = 64
NUM_LAYERS = 2
VOCAB = 100
VOCAB_PAD = 128               # lane-dense one-hot gather matmul
MAX_POS = 16
NUM_LABELS = 5
NUM_LABELS_PAD = 128          # lane-dense kernel output; sliced to NUM_LABELS outside
LN_EPS = 1e-12
NEG_INF = -1e30


# ------------------------------ in-kernel helpers ----------------------------
def _layer_norm(x, g, b):
    mu = jnp.mean(x, axis=-1, keepdims=True)
    var = jnp.mean(jnp.square(x - mu), axis=-1, keepdims=True)
    return (x - mu) * lax.rsqrt(var + LN_EPS) * g + b


def _gelu(x):
    # tanh-approximate GELU (exact-erf BERT GELU differs by <1e-3; kept for
    # robust Mosaic lowering).
    return 0.5 * x * (1.0 + jnp.tanh(0.7978845608028654 * (x + 0.044715 * x * x * x)))


# ------------------------------ fused kernel ---------------------------------
def _fused_forward_kernel(
    ids_ref, mask_ref,
    word_ref, pos_ref, type_ref, emb_g_ref, emb_b_ref,
    qkv_w_ref, qkv_b_ref, ao_w_ref, ao_b_ref,
    ln1_g_ref, ln1_b_ref,
    ff1_w_ref, ff1_b_ref, ff2_w_ref, ff2_b_ref,
    ln2_g_ref, ln2_b_ref,
    pool_w_ref, pool_b_ref, cls_w_ref, cls_b_ref,
    out_ref,
):
    """One grid step = BATCH_TILE batch elements; all activations stay in VMEM."""
    Bt, S = mask_ref.shape
    N = Bt * S

    # ---- fused embedding: one-hot gather matmul + pos/type + LayerNorm ----
    ids = ids_ref[...]                                         # [N, 1] int32
    vocab_iota = lax.broadcasted_iota(jnp.int32, (N, VOCAB_PAD), 1)
    onehot = jnp.where(vocab_iota == ids, 1.0, 0.0).astype(jnp.bfloat16)
    word = jnp.dot(onehot, word_ref[...],
                   preferred_element_type=jnp.float32)         # [N, HIDDEN]
    pos = jnp.concatenate([pos_ref[...]] * Bt, axis=0)         # [N, HIDDEN]
    x = word + pos + type_ref[...]                             # token_type_ids = 0
    # embedding dropout = identity in eval mode
    x = _layer_norm(x, emb_g_ref[...], emb_b_ref[...])

    # ---- additive attention mask, built & broadcast ONCE (hoisted) ----
    addm = (1.0 - mask_ref[...]) * -10000.0                    # [Bt, S]
    masks = [jnp.broadcast_to(addm[bi:bi + 1, :], (S, S)) for bi in range(Bt)]

    for li in range(NUM_LAYERS):
        # ---- fused QKV projection: one [N,H] @ [H,3H] bf16 matmul ----
        # (1/sqrt(HEAD_DIM) is folded into the Q columns at init time)
        qkv = jnp.dot(x.astype(jnp.bfloat16), qkv_w_ref[li],
                      preferred_element_type=jnp.float32) + qkv_b_ref[li]

        # ---- per-batch, per-head attention; head outputs stay in vregs ----
        ctx_rows = []
        for bi in range(Bt):
            r = bi * S
            heads = []
            for h in range(NUM_HEADS):
                lo = h * HEAD_DIM
                q_h = qkv[r:r + S, lo:lo + HEAD_DIM]
                k_h = qkv[r:r + S, HIDDEN + lo:HIDDEN + lo + HEAD_DIM]
                v_h = qkv[r:r + S, 2 * HIDDEN + lo:2 * HIDDEN + lo + HEAD_DIM]
                s = jnp.dot(q_h, k_h.T,
                            preferred_element_type=jnp.float32) + masks[bi]
                s = s - jnp.max(s, axis=-1, keepdims=True)
                p = jnp.exp(s)
                p = p * pl.reciprocal(jnp.sum(p, axis=-1, keepdims=True),
                                      approx=True)
                heads.append(jnp.dot(p, v_h, preferred_element_type=jnp.float32))
            ctx_rows.append(jnp.concatenate(heads, axis=-1))    # [S, HIDDEN]
        ctx = jnp.concatenate(ctx_rows, axis=0)                 # [N, HIDDEN]

        # ---- attention output proj + residual + LN (fused) ----
        attn_out = jnp.dot(ctx.astype(jnp.bfloat16), ao_w_ref[li],
                           preferred_element_type=jnp.float32) + ao_b_ref[li]
        x = _layer_norm(x + attn_out, ln1_g_ref[li], ln1_b_ref[li])

        # ---- FFN + residual + LN (fused) ----
        ff = jnp.dot(x.astype(jnp.bfloat16), ff1_w_ref[li],
                     preferred_element_type=jnp.float32) + ff1_b_ref[li]
        ff = _gelu(ff)
        ff = jnp.dot(ff.astype(jnp.bfloat16), ff2_w_ref[li],
                     preferred_element_type=jnp.float32) + ff2_b_ref[li]
        x = _layer_norm(x + ff, ln2_g_ref[li], ln2_b_ref[li])

    # ---- pooler (tanh linear on CLS rows) + classifier + softmax ----
    cls_rows = jnp.concatenate([x[bi * S:bi * S + 1, :] for bi in range(Bt)],
                               axis=0)                          # [Bt, HIDDEN]
    pooled = jnp.tanh(jnp.dot(cls_rows.astype(jnp.bfloat16), pool_w_ref[...],
                              preferred_element_type=jnp.float32) + pool_b_ref[...])
    # self.dropout(pooler_output) is identity in eval mode
    logit = jnp.dot(pooled.astype(jnp.bfloat16), cls_w_ref[...],
                    preferred_element_type=jnp.float32) + cls_b_ref[...]
    # padded label lanes carry bias NEG_INF -> exp == 0, so the softmax is exact
    # over the 5 real labels despite the lane-dense 128-wide output.
    logit = logit - jnp.max(logit, axis=-1, keepdims=True)
    e = jnp.exp(logit)
    out_ref[...] = (e / jnp.sum(e, axis=-1, keepdims=True)).astype(out_ref.dtype)


def _full_spec(shape):
    """Whole-array VMEM block (same block at every grid step)."""
    zeros = (0,) * len(shape)
    return pl.BlockSpec(shape, lambda b, _z=zeros: _z)


def fused_forward(ids_col, mask_f, p, B, S):
    Bt = BATCH_TILE
    assert B % Bt == 0
    weight_args = [
        p["word_emb"], p["pos_emb"][:S], p["type_emb"][0:1],
        p["emb_ln_g"], p["emb_ln_b"],
        p["qkv_w"], p["qkv_b"], p["ao_w"], p["ao_b"],
        p["ln1_g"], p["ln1_b"],
        p["ff1_w"], p["ff1_b"], p["ff2_w"], p["ff2_b"],
        p["ln2_g"], p["ln2_b"],
        p["pool_w"], p["pool_b"], p["cls_w"], p["cls_b"],
    ]
    in_specs = [
        pl.BlockSpec((Bt * S, 1), lambda b: (b, 0)),            # input ids (column)
        pl.BlockSpec((Bt, S), lambda b: (b, 0)),                # attention mask (0/1)
    ] + [_full_spec(w.shape) for w in weight_args]

    return pl.pallas_call(
        _fused_forward_kernel,
        out_shape=jax.ShapeDtypeStruct((B, NUM_LABELS_PAD), jnp.float32),
        grid=(B // Bt,),
        in_specs=in_specs,
        out_specs=pl.BlockSpec((Bt, NUM_LABELS_PAD), lambda b: (b, 0)),
        compiler_params=pltpu.CompilerParams(
            dimension_semantics=("parallel",)),
    )(ids_col, mask_f, *weight_args)


# --------------------------- parameter construction --------------------------
def init_params(key):
    keys = jax.random.split(key, 9)

    def w(k, shape):
        return 0.02 * jax.random.normal(k, shape, jnp.float32)

    # word embedding table padded to 128 rows for the lane-dense one-hot matmul
    word_emb = jnp.zeros((VOCAB_PAD, HIDDEN), jnp.float32)
    word_emb = word_emb.at[:VOCAB].set(w(keys[0], (VOCAB, HIDDEN)))

    # fused QKV weight with 1/sqrt(HEAD_DIM) folded into the Q columns
    scale = 1.0 / (HEAD_DIM ** 0.5)
    qkv_w = w(keys[3], (NUM_LAYERS, HIDDEN, 3 * HIDDEN))
    qkv_w = qkv_w.at[:, :, :HIDDEN].multiply(scale)
    qkv_b = jnp.zeros((NUM_LAYERS, 1, 3 * HIDDEN), jnp.float32)
    qkv_b = qkv_b.at[:, :, :HIDDEN].multiply(scale)             # no-op (zeros); kept for generality

    # classifier padded to 128 lanes: zero weights / -inf bias on padded labels
    cls_w = jnp.zeros((HIDDEN, NUM_LABELS_PAD), jnp.float32)
    cls_w = cls_w.at[:, :NUM_LABELS].set(w(keys[8], (HIDDEN, NUM_LABELS)))
    cls_b = jnp.full((1, NUM_LABELS_PAD), NEG_INF, jnp.float32)
    cls_b = cls_b.at[:, :NUM_LABELS].set(0.0)

    bf16 = jnp.bfloat16
    return {
        # weight matrices in bf16 (halved DMA bytes, native bf16 MXU path);
        # biases / LN params / pos+type embeddings stay f32.
        "word_emb": word_emb.astype(bf16),
        "pos_emb": w(keys[1], (MAX_POS, HIDDEN)),
        "type_emb": w(keys[2], (2, HIDDEN)),
        "emb_ln_g": jnp.ones((1, HIDDEN), jnp.float32),
        "emb_ln_b": jnp.zeros((1, HIDDEN), jnp.float32),
        "qkv_w": qkv_w.astype(bf16),
        "qkv_b": qkv_b,
        "ao_w": w(keys[4], (NUM_LAYERS, HIDDEN, HIDDEN)).astype(bf16),
        "ao_b": jnp.zeros((NUM_LAYERS, 1, HIDDEN), jnp.float32),
        "ff1_w": w(keys[5], (NUM_LAYERS, HIDDEN, INTERMEDIATE)).astype(bf16),
        "ff1_b": jnp.zeros((NUM_LAYERS, 1, INTERMEDIATE), jnp.float32),
        "ff2_w": w(keys[6], (NUM_LAYERS, INTERMEDIATE, HIDDEN)).astype(bf16),
        "ff2_b": jnp.zeros((NUM_LAYERS, 1, HIDDEN), jnp.float32),
        "ln1_g": jnp.ones((NUM_LAYERS, 1, HIDDEN), jnp.float32),
        "ln1_b": jnp.zeros((NUM_LAYERS, 1, HIDDEN), jnp.float32),
        "ln2_g": jnp.ones((NUM_LAYERS, 1, HIDDEN), jnp.float32),
        "ln2_b": jnp.zeros((NUM_LAYERS, 1, HIDDEN), jnp.float32),
        "pool_w": w(keys[7], (HIDDEN, HIDDEN)).astype(bf16),
        "pool_b": jnp.zeros((1, HIDDEN), jnp.float32),
        "cls_w": cls_w.astype(bf16),
        "cls_b": cls_b,
    }


# ------------------------------ model forward --------------------------------
def bert_sentiment_classifier(params, input_ids, attention_mask):
    B, S = input_ids.shape
    # ids as a [B*S, 1] column so the kernel can build the one-hot gather
    # matmul without an in-kernel reshape; mask passed raw (additive form is
    # built once inside the kernel).
    ids_col = input_ids.astype(jnp.int32).reshape(B * S, 1)
    mask_f = attention_mask.astype(jnp.float32)

    probs_pad = fused_forward(ids_col, mask_f, params, B, S)     # [B, 128]
    # NOTE: the original module's set-unpacking of the bert output dict is a bug;
    # intended semantics (pooler_output -> dropout -> linear -> softmax) is kept.
    return probs_pad[:, :NUM_LABELS]                             # [B, 5]


# ---------------------------------- main --------------------------------------
if __name__ == "__main__":
    key = jax.random.PRNGKey(0)
    k_params, k_ids = jax.random.split(key)

    params = init_params(k_params)
    input_ids = jax.random.randint(k_ids, (BATCH, SEQ), 0, VOCAB, dtype=jnp.int32)
    attention_mask = jnp.ones((BATCH, SEQ), jnp.int32).at[1, SEQ - 2:].set(0)  # padding

    probs = jax.block_until_ready(
        jax.jit(bert_sentiment_classifier)(params, input_ids, attention_mask))

    assert probs.shape == (BATCH, NUM_LABELS)
    assert bool(jnp.all(jnp.isfinite(probs)))
    assert bool(jnp.allclose(jnp.sum(probs, axis=1), 1.0, atol=1e-5))  # softmax rows
    print("KERNEL_OK")
</pallas_src>

<mosaic_0001>
module attributes {stable_mosaic.version = 11 : i64} {
  func.func @_fused_forward_kernel(%arg0: i32, %arg1: memref<16x1xi32, #tpu.memory_space<vmem>>, %arg2: memref<2x8xf32, #tpu.memory_space<vmem>>, %arg3: memref<128x32xbf16, #tpu.memory_space<vmem>>, %arg4: memref<8x32xf32, #tpu.memory_space<vmem>>, %arg5: memref<1x32xf32, #tpu.memory_space<vmem>>, %arg6: memref<1x32xf32, #tpu.memory_space<vmem>>, %arg7: memref<1x32xf32, #tpu.memory_space<vmem>>, %arg8: memref<2x32x96xbf16, #tpu.memory_space<vmem>>, %arg9: memref<2x1x96xf32, #tpu.memory_space<vmem>>, %arg10: memref<2x32x32xbf16, #tpu.memory_space<vmem>>, %arg11: memref<2x1x32xf32, #tpu.memory_space<vmem>>, %arg12: memref<2x1x32xf32, #tpu.memory_space<vmem>>, %arg13: memref<2x1x32xf32, #tpu.memory_space<vmem>>, %arg14: memref<2x32x64xbf16, #tpu.memory_space<vmem>>, %arg15: memref<2x1x64xf32, #tpu.memory_space<vmem>>, %arg16: memref<2x64x32xbf16, #tpu.memory_space<vmem>>, %arg17: memref<2x1x32xf32, #tpu.memory_space<vmem>>, %arg18: memref<2x1x32xf32, #tpu.memory_space<vmem>>, %arg19: memref<2x1x32xf32, #tpu.memory_space<vmem>>, %arg20: memref<32x32xbf16, #tpu.memory_space<vmem>>, %arg21: memref<1x32xf32, #tpu.memory_space<vmem>>, %arg22: memref<32x128xbf16, #tpu.memory_space<vmem>>, %arg23: memref<1x128xf32, #tpu.memory_space<vmem>>, %arg24: memref<2x128xf32, #tpu.memory_space<vmem>>) attributes {dimension_semantics = [#tpu.dimension_semantics<parallel>], iteration_bounds = array<i64: 1>, scalar_prefetch = 0 : i64, scratch_operands = 0 : i64, tpu.core_type = #tpu.core_type<tc>, window_params = [{transform_indices = @transform_0, window_bounds = array<i64: 16, 1>}, {transform_indices = @transform_1, window_bounds = array<i64: 2, 8>}, {pipeline_mode = #tpu.pipeline_mode<synchronous>, transform_indices = @transform_2, window_bounds = array<i64: 128, 32>}, {pipeline_mode = #tpu.pipeline_mode<synchronous>, transform_indices = @transform_3, window_bounds = array<i64: 8, 32>}, {pipeline_mode = #tpu.pipeline_mode<synchronous>, transform_indices = @transform_4, window_bounds = array<i64: 1, 32>}, {pipeline_mode = #tpu.pipeline_mode<synchronous>, transform_indices = @transform_5, window_bounds = array<i64: 1, 32>}, {pipeline_mode = #tpu.pipeline_mode<synchronous>, transform_indices = @transform_6, window_bounds = array<i64: 1, 32>}, {pipeline_mode = #tpu.pipeline_mode<synchronous>, transform_indices = @transform_7, window_bounds = array<i64: 2, 32, 96>}, {pipeline_mode = #tpu.pipeline_mode<synchronous>, transform_indices = @transform_8, window_bounds = array<i64: 2, 1, 96>}, {pipeline_mode = #tpu.pipeline_mode<synchronous>, transform_indices = @transform_9, window_bounds = array<i64: 2, 32, 32>}, {pipeline_mode = #tpu.pipeline_mode<synchronous>, transform_indices = @transform_10, window_bounds = array<i64: 2, 1, 32>}, {pipeline_mode = #tpu.pipeline_mode<synchronous>, transform_indices = @transform_11, window_bounds = array<i64: 2, 1, 32>}, {pipeline_mode = #tpu.pipeline_mode<synchronous>, transform_indices = @transform_12, window_bounds = array<i64: 2, 1, 32>}, {pipeline_mode = #tpu.pipeline_mode<synchronous>, transform_indices = @transform_13, window_bounds = array<i64: 2, 32, 64>}, {pipeline_mode = #tpu.pipeline_mode<synchronous>, transform_indices = @transform_14, window_bounds = array<i64: 2, 1, 64>}, {pipeline_mode = #tpu.pipeline_mode<synchronous>, transform_indices = @transform_15, window_bounds = array<i64: 2, 64, 32>}, {pipeline_mode = #tpu.pipeline_mode<synchronous>, transform_indices = @transform_16, window_bounds = array<i64: 2, 1, 32>}, {pipeline_mode = #tpu.pipeline_mode<synchronous>, transform_indices = @transform_17, window_bounds = array<i64: 2, 1, 32>}, {pipeline_mode = #tpu.pipeline_mode<synchronous>, transform_indices = @transform_18, window_bounds = array<i64: 2, 1, 32>}, {pipeline_mode = #tpu.pipeline_mode<synchronous>, transform_indices = @transform_19, window_bounds = array<i64: 32, 32>}, {pipeline_mode = #tpu.pipeline_mode<synchronous>, transform_indices = @transform_20, window_bounds = array<i64: 1, 32>}, {pipeline_mode = #tpu.pipeline_mode<synchronous>, transform_indices = @transform_21, window_bounds = array<i64: 32, 128>}, {pipeline_mode = #tpu.pipeline_mode<synchronous>, transform_indices = @transform_22, window_bounds = array<i64: 1, 128>}, {transform_indices = @transform_23, window_bounds = array<i64: 2, 128>}]} {
    %c0 = arith.constant 0 : index
    %c0_0 = arith.constant 0 : index
    %0 = vector.load %arg1[%c0, %c0_0] : memref<16x1xi32, #tpu.memory_space<vmem>>, vector<16x1xi32>
    %1 = tpu.iota {dimensions = array<i32: 1>} : vector<16x128xi32>
    %2 = vector.broadcast %0 : vector<16x1xi32> to vector<16x128xi32>
    %3 = arith.cmpi eq, %1, %2 : vector<16x128xi32>
    %cst = arith.constant 1.000000e+00 : f32
    %cst_1 = arith.constant 0.000000e+00 : f32
    %4 = vector.broadcast %cst : f32 to vector<16x128xf32>
    %5 = vector.broadcast %cst_1 : f32 to vector<16x128xf32>
    %6 = arith.select %3, %4, %5 : vector<16x128xi1>, vector<16x128xf32>
    %7 = arith.truncf %6 : vector<16x128xf32> to vector<16x128xbf16>
    %c0_2 = arith.constant 0 : index
    %c0_3 = arith.constant 0 : index
    %8 = vector.load %arg3[%c0_2, %c0_3] : memref<128x32xbf16, #tpu.memory_space<vmem>>, vector<128x32xbf16>
    %cst_4 = arith.constant dense<0.000000e+00> : vector<16x32xf32>
    %9 = tpu.matmul %7, %8, %cst_4 {dimension_numbers = #tpu.dot_dimension_numbers<[1], [0], [0], [1], [0, 0, 1, 1], [], []>} : vector<16x128xbf16>, vector<128x32xbf16>, vector<16x32xf32> -> vector<16x32xf32>
    %c0_5 = arith.constant 0 : index
    %c0_6 = arith.constant 0 : index
    %10 = vector.load %arg4[%c0_5, %c0_6] : memref<8x32xf32, #tpu.memory_space<vmem>>, vector<8x32xf32>
    %11 = tpu.concatenate %10, %10 in 0 : vector<8x32xf32>, vector<8x32xf32> -> vector<16x32xf32>
    %12 = arith.addf %9, %11 : vector<16x32xf32>
    %c0_7 = arith.constant 0 : index
    %c0_8 = arith.constant 0 : index
    %13 = vector.load %arg5[%c0_7, %c0_8] : memref<1x32xf32, #tpu.memory_space<vmem>>, vector<1x32xf32>
    %14 = vector.broadcast %13 : vector<1x32xf32> to vector<16x32xf32>
    %15 = arith.addf %12, %14 : vector<16x32xf32>
    %c0_9 = arith.constant 0 : index
    %c0_10 = arith.constant 0 : index
    %16 = vector.load %arg6[%c0_9, %c0_10] : memref<1x32xf32, #tpu.memory_space<vmem>>, vector<1x32xf32>
    %c0_11 = arith.constant 0 : index
    %c0_12 = arith.constant 0 : index
    %17 = vector.load %arg7[%c0_11, %c0_12] : memref<1x32xf32, #tpu.memory_space<vmem>>, vector<1x32xf32>
    %cst_13 = arith.constant dense<0.000000e+00> : vector<16xf32>
    %18 = vector.multi_reduction <add>, %15, %cst_13 [1] : vector<16x32xf32> to vector<16xf32>
    %19 = vector.shape_cast %18 : vector<16xf32> to vector<16x1xf32>
    %cst_14 = arith.constant 3.200000e+01 : f32
    %20 = vector.broadcast %cst_14 : f32 to vector<16x1xf32>
    %21 = arith.divf %19, %20 : vector<16x1xf32>
    %22 = vector.broadcast %21 : vector<16x1xf32> to vector<16x32xf32>
    %23 = arith.subf %15, %22 : vector<16x32xf32>
    %24 = arith.mulf %23, %23 : vector<16x32xf32>
    %cst_15 = arith.constant dense<0.000000e+00> : vector<16xf32>
    %25 = vector.multi_reduction <add>, %24, %cst_15 [1] : vector<16x32xf32> to vector<16xf32>
    %26 = vector.shape_cast %25 : vector<16xf32> to vector<16x1xf32>
    %cst_16 = arith.constant 3.200000e+01 : f32
    %27 = vector.broadcast %cst_16 : f32 to vector<16x1xf32>
    %28 = arith.divf %26, %27 : vector<16x1xf32>
    %29 = vector.broadcast %21 : vector<16x1xf32> to vector<16x32xf32>
    %30 = arith.subf %15, %29 : vector<16x32xf32>
    %cst_17 = arith.constant 9.99999996E-13 : f32
    %31 = vector.broadcast %cst_17 : f32 to vector<16x1xf32>
    %32 = arith.addf %28, %31 : vector<16x1xf32>
    %33 = math.rsqrt %32 : vector<16x1xf32>
    %34 = vector.broadcast %33 : vector<16x1xf32> to vector<16x32xf32>
    %35 = arith.mulf %30, %34 : vector<16x32xf32>
    %36 = vector.broadcast %16 : vector<1x32xf32> to vector<16x32xf32>
    %37 = arith.mulf %35, %36 : vector<16x32xf32>
    %38 = vector.broadcast %17 : vector<1x32xf32> to vector<16x32xf32>
    %39 = arith.addf %37, %38 : vector<16x32xf32>
    %c0_18 = arith.constant 0 : index
    %c0_19 = arith.constant 0 : index
    %40 = vector.load %arg2[%c0_18, %c0_19] : memref<2x8xf32, #tpu.memory_space<vmem>>, vector<2x8xf32>
    %cst_20 = arith.constant 1.000000e+00 : f32
    %41 = vector.broadcast %cst_20 : f32 to vector<2x8xf32>
    %42 = arith.subf %41, %40 : vector<2x8xf32>
    %cst_21 = arith.constant -1.000000e+04 : f32
    %43 = vector.broadcast %cst_21 : f32 to vector<2x8xf32>
    %44 = arith.mulf %42, %43 : vector<2x8xf32>
    %45 = vector.extract_strided_slice %44 {offsets = [0, 0], sizes = [1, 8], strides = [1, 1]} : vector<2x8xf32> to vector<1x8xf32>
    %46 = vector.shape_cast %45 : vector<1x8xf32> to vector<1x8xf32>
    %47 = vector.broadcast %46 : vector<1x8xf32> to vector<8x8xf32>
    %48 = vector.extract_strided_slice %44 {offsets = [1, 0], sizes = [1, 8], strides = [1, 1]} : vector<2x8xf32> to vector<1x8xf32>
    %49 = vector.shape_cast %48 : vector<1x8xf32> to vector<1x8xf32>
    %50 = vector.broadcast %49 : vector<1x8xf32> to vector<8x8xf32>
    %51 = arith.truncf %39 : vector<16x32xf32> to vector<16x32xbf16>
    %c0_22 = arith.constant 0 : index
    %c0_23 = arith.constant 0 : index
    %c0_24 = arith.constant 0 : index
    %52 = vector.load %arg8[%c0_22, %c0_23, %c0_24] : memref<2x32x96xbf16, #tpu.memory_space<vmem>>, vector<1x32x96xbf16>
    %53 = vector.shape_cast %52 : vector<1x32x96xbf16> to vector<32x96xbf16>
    %cst_25 = arith.constant dense<0.000000e+00> : vector<16x96xf32>
    %54 = tpu.matmul %51, %53, %cst_25 {dimension_numbers = #tpu.dot_dimension_numbers<[1], [0], [0], [1], [0, 0, 1, 1], [], []>} : vector<16x32xbf16>, vector<32x96xbf16>, vector<16x96xf32> -> vector<16x96xf32>
    %c0_26 = arith.constant 0 : index
    %c0_27 = arith.constant 0 : index
    %c0_28 = arith.constant 0 : index
    %55 = vector.load %arg9[%c0_26, %c0_27, %c0_28] : memref<2x1x96xf32, #tpu.memory_space<vmem>>, vector<1x1x96xf32>
    %56 = vector.shape_cast %55 : vector<1x1x96xf32> to vector<1x96xf32>
    %57 = vector.broadcast %56 : vector<1x96xf32> to vector<16x96xf32>
    %58 = arith.addf %54, %57 : vector<16x96xf32>
    %59 = vector.extract_strided_slice %58 {offsets = [0, 0], sizes = [8, 16], strides = [1, 1]} : vector<16x96xf32> to vector<8x16xf32>
    %60 = vector.extract_strided_slice %58 {offsets = [0, 32], sizes = [8, 16], strides = [1, 1]} : vector<16x96xf32> to vector<8x16xf32>
    %61 = vector.extract_strided_slice %58 {offsets = [0, 64], sizes = [8, 16], strides = [1, 1]} : vector<16x96xf32> to vector<8x16xf32>
    %62 = tpu.transpose %60, [1, 0] : vector<8x16xf32> -> vector<16x8xf32>
    %cst_29 = arith.constant dense<0.000000e+00> : vector<8x8xf32>
    %63 = tpu.matmul %59, %62, %cst_29 {dimension_numbers = #tpu.dot_dimension_numbers<[1], [0], [0], [1], [0, 0, 1, 1], [], []>} : vector<8x16xf32>, vector<16x8xf32>, vector<8x8xf32> -> vector<8x8xf32>
    %64 = arith.addf %63, %47 : vector<8x8xf32>
    %cst_30 = arith.constant dense<0xFF800000> : vector<8xf32>
    %65 = vector.multi_reduction <maximumf>, %64, %cst_30 [1] : vector<8x8xf32> to vector<8xf32>
    %66 = vector.shape_cast %65 : vector<8xf32> to vector<8x1xf32>
    %67 = vector.broadcast %66 : vector<8x1xf32> to vector<8x8xf32>
    %68 = arith.subf %64, %67 : vector<8x8xf32>
    %69 = math.exp %68 : vector<8x8xf32>
    %cst_31 = arith.constant dense<0.000000e+00> : vector<8xf32>
    %70 = vector.multi_reduction <add>, %69, %cst_31 [1] : vector<8x8xf32> to vector<8xf32>
    %71 = vector.shape_cast %70 : vector<8xf32> to vector<8x1xf32>
    %72 = tpu.reciprocal %71 {approx = true} : vector<8x1xf32> -> vector<8x1xf32>
    %73 = vector.broadcast %72 : vector<8x1xf32> to vector<8x8xf32>
    %74 = arith.mulf %69, %73 : vector<8x8xf32>
    %cst_32 = arith.constant dense<0.000000e+00> : vector<8x16xf32>
    %75 = tpu.matmul %74, %61, %cst_32 {dimension_numbers = #tpu.dot_dimension_numbers<[1], [0], [0], [1], [0, 0, 1, 1], [], []>} : vector<8x8xf32>, vector<8x16xf32>, vector<8x16xf32> -> vector<8x16xf32>
    %76 = vector.extract_strided_slice %58 {offsets = [0, 16], sizes = [8, 16], strides = [1, 1]} : vector<16x96xf32> to vector<8x16xf32>
    %77 = vector.extract_strided_slice %58 {offsets = [0, 48], sizes = [8, 16], strides = [1, 1]} : vector<16x96xf32> to vector<8x16xf32>
    %78 = vector.extract_strided_slice %58 {offsets = [0, 80], sizes = [8, 16], strides = [1, 1]} : vector<16x96xf32> to vector<8x16xf32>
    %79 = tpu.transpose %77, [1, 0] : vector<8x16xf32> -> vector<16x8xf32>
    %cst_33 = arith.constant dense<0.000000e+00> : vector<8x8xf32>
    %80 = tpu.matmul %76, %79, %cst_33 {dimension_numbers = #tpu.dot_dimension_numbers<[1], [0], [0], [1], [0, 0, 1, 1], [], []>} : vector<8x16xf32>, vector<16x8xf32>, vector<8x8xf32> -> vector<8x8xf32>
    %81 = arith.addf %80, %47 : vector<8x8xf32>
    %cst_34 = arith.constant dense<0xFF800000> : vector<8xf32>
    %82 = vector.multi_reduction <maximumf>, %81, %cst_34 [1] : vector<8x8xf32> to vector<8xf32>
    %83 = vector.shape_cast %82 : vector<8xf32> to vector<8x1xf32>
    %84 = vector.broadcast %83 : vector<8x1xf32> to vector<8x8xf32>
    %85 = arith.subf %81, %84 : vector<8x8xf32>
    %86 = math.exp %85 : vector<8x8xf32>
    %cst_35 = arith.constant dense<0.000000e+00> : vector<8xf32>
    %87 = vector.multi_reduction <add>, %86, %cst_35 [1] : vector<8x8xf32> to vector<8xf32>
    %88 = vector.shape_cast %87 : vector<8xf32> to vector<8x1xf32>
    %89 = tpu.reciprocal %88 {approx = true} : vector<8x1xf32> -> vector<8x1xf32>
    %90 = vector.broadcast %89 : vector<8x1xf32> to vector<8x8xf32>
    %91 = arith.mulf %86, %90 : vector<8x8xf32>
    %cst_36 = arith.constant dense<0.000000e+00> : vector<8x16xf32>
    %92 = tpu.matmul %91, %78, %cst_36 {dimension_numbers = #tpu.dot_dimension_numbers<[1], [0], [0], [1], [0, 0, 1, 1], [], []>} : vector<8x8xf32>, vector<8x16xf32>, vector<8x16xf32> -> vector<8x16xf32>
    %93 = tpu.concatenate %75, %92 in 1 : vector<8x16xf32>, vector<8x16xf32> -> vector<8x32xf32>
    %94 = vector.extract_strided_slice %58 {offsets = [8, 0], sizes = [8, 16], strides = [1, 1]} : vector<16x96xf32> to vector<8x16xf32>
    %95 = vector.extract_strided_slice %58 {offsets = [8, 32], sizes = [8, 16], strides = [1, 1]} : vector<16x96xf32> to vector<8x16xf32>
    %96 = vector.extract_strided_slice %58 {offsets = [8, 64], sizes = [8, 16], strides = [1, 1]} : vector<16x96xf32> to vector<8x16xf32>
    %97 = tpu.transpose %95, [1, 0] : vector<8x16xf32> -> vector<16x8xf32>
    %cst_37 = arith.constant dense<0.000000e+00> : vector<8x8xf32>
    %98 = tpu.matmul %94, %97, %cst_37 {dimension_numbers = #tpu.dot_dimension_numbers<[1], [0], [0], [1], [0, 0, 1, 1], [], []>} : vector<8x16xf32>, vector<16x8xf32>, vector<8x8xf32> -> vector<8x8xf32>
    %99 = arith.addf %98, %50 : vector<8x8xf32>
    %cst_38 = arith.constant dense<0xFF800000> : vector<8xf32>
    %100 = vector.multi_reduction <maximumf>, %99, %cst_38 [1] : vector<8x8xf32> to vector<8xf32>
    %101 = vector.shape_cast %100 : vector<8xf32> to vector<8x1xf32>
    %102 = vector.broadcast %101 : vector<8x1xf32> to vector<8x8xf32>
    %103 = arith.subf %99, %102 : vector<8x8xf32>
    %104 = math.exp %103 : vector<8x8xf32>
    %cst_39 = arith.constant dense<0.000000e+00> : vector<8xf32>
    %105 = vector.multi_reduction <add>, %104, %cst_39 [1] : vector<8x8xf32> to vector<8xf32>
    %106 = vector.shape_cast %105 : vector<8xf32> to vector<8x1xf32>
    %107 = tpu.reciprocal %106 {approx = true} : vector<8x1xf32> -> vector<8x1xf32>
    %108 = vector.broadcast %107 : vector<8x1xf32> to vector<8x8xf32>
    %109 = arith.mulf %104, %108 : vector<8x8xf32>
    %cst_40 = arith.constant dense<0.000000e+00> : vector<8x16xf32>
    %110 = tpu.matmul %109, %96, %cst_40 {dimension_numbers = #tpu.dot_dimension_numbers<[1], [0], [0], [1], [0, 0, 1, 1], [], []>} : vector<8x8xf32>, vector<8x16xf32>, vector<8x16xf32> -> vector<8x16xf32>
    %111 = vector.extract_strided_slice %58 {offsets = [8, 16], sizes = [8, 16], strides = [1, 1]} : vector<16x96xf32> to vector<8x16xf32>
    %112 = vector.extract_strided_slice %58 {offsets = [8, 48], sizes = [8, 16], strides = [1, 1]} : vector<16x96xf32> to vector<8x16xf32>
    %113 = vector.extract_strided_slice %58 {offsets = [8, 80], sizes = [8, 16], strides = [1, 1]} : vector<16x96xf32> to vector<8x16xf32>
    %114 = tpu.transpose %112, [1, 0] : vector<8x16xf32> -> vector<16x8xf32>
    %cst_41 = arith.constant dense<0.000000e+00> : vector<8x8xf32>
    %115 = tpu.matmul %111, %114, %cst_41 {dimension_numbers = #tpu.dot_dimension_numbers<[1], [0], [0], [1], [0, 0, 1, 1], [], []>} : vector<8x16xf32>, vector<16x8xf32>, vector<8x8xf32> -> vector<8x8xf32>
    %116 = arith.addf %115, %50 : vector<8x8xf32>
    %cst_42 = arith.constant dense<0xFF800000> : vector<8xf32>
    %117 = vector.multi_reduction <maximumf>, %116, %cst_42 [1] : vector<8x8xf32> to vector<8xf32>
    %118 = vector.shape_cast %117 : vector<8xf32> to vector<8x1xf32>
    %119 = vector.broadcast %118 : vector<8x1xf32> to vector<8x8xf32>
    %120 = arith.subf %116, %119 : vector<8x8xf32>
    %121 = math.exp %120 : vector<8x8xf32>
    %cst_43 = arith.constant dense<0.000000e+00> : vector<8xf32>
    %122 = vector.multi_reduction <add>, %121, %cst_43 [1] : vector<8x8xf32> to vector<8xf32>
    %123 = vector.shape_cast %122 : vector<8xf32> to vector<8x1xf32>
    %124 = tpu.reciprocal %123 {approx = true} : vector<8x1xf32> -> vector<8x1xf32>
    %125 = vector.broadcast %124 : vector<8x1xf32> to vector<8x8xf32>
    %126 = arith.mulf %121, %125 : vector<8x8xf32>
    %cst_44 = arith.constant dense<0.000000e+00> : vector<8x16xf32>
    %127 = tpu.matmul %126, %113, %cst_44 {dimension_numbers = #tpu.dot_dimension_numbers<[1], [0], [0], [1], [0, 0, 1, 1], [], []>} : vector<8x8xf32>, vector<8x16xf32>, vector<8x16xf32> -> vector<8x16xf32>
    %128 = tpu.concatenate %110, %127 in 1 : vector<8x16xf32>, vector<8x16xf32> -> vector<8x32xf32>
    %129 = tpu.concatenate %93, %128 in 0 : vector<8x32xf32>, vector<8x32xf32> -> vector<16x32xf32>
    %130 = arith.truncf %129 : vector<16x32xf32> to vector<16x32xbf16>
    %c0_45 = arith.constant 0 : index
    %c0_46 = arith.constant 0 : index
    %c0_47 = arith.constant 0 : index
    %131 = vector.load %arg10[%c0_45, %c0_46, %c0_47] : memref<2x32x32xbf16, #tpu.memory_space<vmem>>, vector<1x32x32xbf16>
    %132 = vector.shape_cast %131 : vector<1x32x32xbf16> to vector<32x32xbf16>
    %cst_48 = arith.constant dense<0.000000e+00> : vector<16x32xf32>
    %133 = tpu.matmul %130, %132, %cst_48 {dimension_numbers = #tpu.dot_dimension_numbers<[1], [0], [0], [1], [0, 0, 1, 1], [], []>} : vector<16x32xbf16>, vector<32x32xbf16>, vector<16x32xf32> -> vector<16x32xf32>
    %c0_49 = arith.constant 0 : index
    %c0_50 = arith.constant 0 : index
    %c0_51 = arith.constant 0 : index
    %134 = vector.load %arg11[%c0_49, %c0_50, %c0_51] : memref<2x1x32xf32, #tpu.memory_space<vmem>>, vector<1x1x32xf32>
    %135 = vector.shape_cast %134 : vector<1x1x32xf32> to vector<1x32xf32>
    %136 = vector.broadcast %135 : vector<1x32xf32> to vector<16x32xf32>
    %137 = arith.addf %133, %136 : vector<16x32xf32>
    %138 = arith.addf %39, %137 : vector<16x32xf32>
    %c0_52 = arith.constant 0 : index
    %c0_53 = arith.constant 0 : index
    %c0_54 = arith.constant 0 : index
    %139 = vector.load %arg12[%c0_52, %c0_53, %c0_54] : memref<2x1x32xf32, #tpu.memory_space<vmem>>, vector<1x1x32xf32>
    %140 = vector.shape_cast %139 : vector<1x1x32xf32> to vector<1x32xf32>
    %c0_55 = arith.constant 0 : index
    %c0_56 = arith.constant 0 : index
    %c0_57 = arith.constant 0 : index
    %141 = vector.load %arg13[%c0_55, %c0_56, %c0_57] : memref<2x1x32xf32, #tpu.memory_space<vmem>>, vector<1x1x32xf32>
    %142 = vector.shape_cast %141 : vector<1x1x32xf32> to vector<1x32xf32>
    %cst_58 = arith.constant dense<0.000000e+00> : vector<16xf32>
    %143 = vector.multi_reduction <add>, %138, %cst_58 [1] : vector<16x32xf32> to vector<16xf32>
    %144 = vector.shape_cast %143 : vector<16xf32> to vector<16x1xf32>
    %cst_59 = arith.constant 3.200000e+01 : f32
    %145 = vector.broadcast %cst_59 : f32 to vector<16x1xf32>
    %146 = arith.divf %144, %145 : vector<16x1xf32>
    %147 = vector.broadcast %146 : vector<16x1xf32> to vector<16x32xf32>
    %148 = arith.subf %138, %147 : vector<16x32xf32>
    %149 = arith.mulf %148, %148 : vector<16x32xf32>
    %cst_60 = arith.constant dense<0.000000e+00> : vector<16xf32>
    %150 = vector.multi_reduction <add>, %149, %cst_60 [1] : vector<16x32xf32> to vector<16xf32>
    %151 = vector.shape_cast %150 : vector<16xf32> to vector<16x1xf32>
    %cst_61 = arith.constant 3.200000e+01 : f32
    %152 = vector.broadcast %cst_61 : f32 to vector<16x1xf32>
    %153 = arith.divf %151, %152 : vector<16x1xf32>
    %154 = vector.broadcast %146 : vector<16x1xf32> to vector<16x32xf32>
    %155 = arith.subf %138, %154 : vector<16x32xf32>
    %cst_62 = arith.constant 9.99999996E-13 : f32
    %156 = vector.broadcast %cst_62 : f32 to vector<16x1xf32>
    %157 = arith.addf %153, %156 : vector<16x1xf32>
    %158 = math.rsqrt %157 : vector<16x1xf32>
    %159 = vector.broadcast %158 : vector<16x1xf32> to vector<16x32xf32>
    %160 = arith.mulf %155, %159 : vector<16x32xf32>
    %161 = vector.broadcast %140 : vector<1x32xf32> to vector<16x32xf32>
    %162 = arith.mulf %160, %161 : vector<16x32xf32>
    %163 = vector.broadcast %142 : vector<1x32xf32> to vector<16x32xf32>
    %164 = arith.addf %162, %163 : vector<16x32xf32>
    %165 = arith.truncf %164 : vector<16x32xf32> to vector<16x32xbf16>
    %c0_63 = arith.constant 0 : index
    %c0_64 = arith.constant 0 : index
    %c0_65 = arith.constant 0 : index
    %166 = vector.load %arg14[%c0_63, %c0_64, %c0_65] : memref<2x32x64xbf16, #tpu.memory_space<vmem>>, vector<1x32x64xbf16>
    %167 = vector.shape_cast %166 : vector<1x32x64xbf16> to vector<32x64xbf16>
    %cst_66 = arith.constant dense<0.000000e+00> : vector<16x64xf32>
    %168 = tpu.matmul %165, %167, %cst_66 {dimension_numbers = #tpu.dot_dimension_numbers<[1], [0], [0], [1], [0, 0, 1, 1], [], []>} : vector<16x32xbf16>, vector<32x64xbf16>, vector<16x64xf32> -> vector<16x64xf32>
    %c0_67 = arith.constant 0 : index
    %c0_68 = arith.constant 0 : index
    %c0_69 = arith.constant 0 : index
    %169 = vector.load %arg15[%c0_67, %c0_68, %c0_69] : memref<2x1x64xf32, #tpu.memory_space<vmem>>, vector<1x1x64xf32>
    %170 = vector.shape_cast %169 : vector<1x1x64xf32> to vector<1x64xf32>
    %171 = vector.broadcast %170 : vector<1x64xf32> to vector<16x64xf32>
    %172 = arith.addf %168, %171 : vector<16x64xf32>
    %cst_70 = arith.constant 5.000000e-01 : f32
    %173 = vector.broadcast %cst_70 : f32 to vector<16x64xf32>
    %174 = arith.mulf %173, %172 : vector<16x64xf32>
    %cst_71 = arith.constant 4.471500e-02 : f32
    %175 = vector.broadcast %cst_71 : f32 to vector<16x64xf32>
    %176 = arith.mulf %175, %172 : vector<16x64xf32>
    %177 = arith.mulf %176, %172 : vector<16x64xf32>
    %178 = arith.mulf %177, %172 : vector<16x64xf32>
    %179 = arith.addf %172, %178 : vector<16x64xf32>
    %cst_72 = arith.constant 0.797884583 : f32
    %180 = vector.broadcast %cst_72 : f32 to vector<16x64xf32>
    %181 = arith.mulf %180, %179 : vector<16x64xf32>
    %182 = math.tanh %181 : vector<16x64xf32>
    %cst_73 = arith.constant 1.000000e+00 : f32
    %183 = vector.broadcast %cst_73 : f32 to vector<16x64xf32>
    %184 = arith.addf %183, %182 : vector<16x64xf32>
    %185 = arith.mulf %174, %184 : vector<16x64xf32>
    %186 = arith.truncf %185 : vector<16x64xf32> to vector<16x64xbf16>
    %c0_74 = arith.constant 0 : index
    %c0_75 = arith.constant 0 : index
    %c0_76 = arith.constant 0 : index
    %187 = vector.load %arg16[%c0_74, %c0_75, %c0_76] : memref<2x64x32xbf16, #tpu.memory_space<vmem>>, vector<1x64x32xbf16>
    %188 = vector.shape_cast %187 : vector<1x64x32xbf16> to vector<64x32xbf16>
    %cst_77 = arith.constant dense<0.000000e+00> : vector<16x32xf32>
    %189 = tpu.matmul %186, %188, %cst_77 {dimension_numbers = #tpu.dot_dimension_numbers<[1], [0], [0], [1], [0, 0, 1, 1], [], []>} : vector<16x64xbf16>, vector<64x32xbf16>, vector<16x32xf32> -> vector<16x32xf32>
    %c0_78 = arith.constant 0 : index
    %c0_79 = arith.constant 0 : index
    %c0_80 = arith.constant 0 : index
    %190 = vector.load %arg17[%c0_78, %c0_79, %c0_80] : memref<2x1x32xf32, #tpu.memory_space<vmem>>, vector<1x1x32xf32>
    %191 = vector.shape_cast %190 : vector<1x1x32xf32> to vector<1x32xf32>
    %192 = vector.broadcast %191 : vector<1x32xf32> to vector<16x32xf32>
    %193 = arith.addf %189, %192 : vector<16x32xf32>
    %194 = arith.addf %164, %193 : vector<16x32xf32>
    %c0_81 = arith.constant 0 : index
    %c0_82 = arith.constant 0 : index
    %c0_83 = arith.constant 0 : index
    %195 = vector.load %arg18[%c0_81, %c0_82, %c0_83] : memref<2x1x32xf32, #tpu.memory_space<vmem>>, vector<1x1x32xf32>
    %196 = vector.shape_cast %195 : vector<1x1x32xf32> to vector<1x32xf32>
    %c0_84 = arith.constant 0 : index
    %c0_85 = arith.constant 0 : index
    %c0_86 = arith.constant 0 : index
    %197 = vector.load %arg19[%c0_84, %c0_85, %c0_86] : memref<2x1x32xf32, #tpu.memory_space<vmem>>, vector<1x1x32xf32>
    %198 = vector.shape_cast %197 : vector<1x1x32xf32> to vector<1x32xf32>
    %cst_87 = arith.constant dense<0.000000e+00> : vector<16xf32>
    %199 = vector.multi_reduction <add>, %194, %cst_87 [1] : vector<16x32xf32> to vector<16xf32>
    %200 = vector.shape_cast %199 : vector<16xf32> to vector<16x1xf32>
    %cst_88 = arith.constant 3.200000e+01 : f32
    %201 = vector.broadcast %cst_88 : f32 to vector<16x1xf32>
    %202 = arith.divf %200, %201 : vector<16x1xf32>
    %203 = vector.broadcast %202 : vector<16x1xf32> to vector<16x32xf32>
    %204 = arith.subf %194, %203 : vector<16x32xf32>
    %205 = arith.mulf %204, %204 : vector<16x32xf32>
    %cst_89 = arith.constant dense<0.000000e+00> : vector<16xf32>
    %206 = vector.multi_reduction <add>, %205, %cst_89 [1] : vector<16x32xf32> to vector<16xf32>
    %207 = vector.shape_cast %206 : vector<16xf32> to vector<16x1xf32>
    %cst_90 = arith.constant 3.200000e+01 : f32
    %208 = vector.broadcast %cst_90 : f32 to vector<16x1xf32>
    %209 = arith.divf %207, %208 : vector<16x1xf32>
    %210 = vector.broadcast %202 : vector<16x1xf32> to vector<16x32xf32>
    %211 = arith.subf %194, %210 : vector<16x32xf32>
    %cst_91 = arith.constant 9.99999996E-13 : f32
    %212 = vector.broadcast %cst_91 : f32 to vector<16x1xf32>
    %213 = arith.addf %209, %212 : vector<16x1xf32>
    %214 = math.rsqrt %213 : vector<16x1xf32>
    %215 = vector.broadcast %214 : vector<16x1xf32> to vector<16x32xf32>
    %216 = arith.mulf %211, %215 : vector<16x32xf32>
    %217 = vector.broadcast %196 : vector<1x32xf32> to vector<16x32xf32>
    %218 = arith.mulf %216, %217 : vector<16x32xf32>
    %219 = vector.broadcast %198 : vector<1x32xf32> to vector<16x32xf32>
    %220 = arith.addf %218, %219 : vector<16x32xf32>
    %221 = arith.truncf %220 : vector<16x32xf32> to vector<16x32xbf16>
    %c1 = arith.constant 1 : index
    %c0_92 = arith.constant 0 : index
    %c0_93 = arith.constant 0 : index
    %222 = vector.load %arg8[%c1, %c0_92, %c0_93] : memref<2x32x96xbf16, #tpu.memory_space<vmem>>, vector<1x32x96xbf16>
    %223 = vector.shape_cast %222 : vector<1x32x96xbf16> to vector<32x96xbf16>
    %cst_94 = arith.constant dense<0.000000e+00> : vector<16x96xf32>
    %224 = tpu.matmul %221, %223, %cst_94 {dimension_numbers = #tpu.dot_dimension_numbers<[1], [0], [0], [1], [0, 0, 1, 1], [], []>} : vector<16x32xbf16>, vector<32x96xbf16>, vector<16x96xf32> -> vector<16x96xf32>
    %c1_95 = arith.constant 1 : index
    %c0_96 = arith.constant 0 : index
    %c0_97 = arith.constant 0 : index
    %225 = vector.load %arg9[%c1_95, %c0_96, %c0_97] : memref<2x1x96xf32, #tpu.memory_space<vmem>>, vector<1x1x96xf32>
    %226 = vector.shape_cast %225 : vector<1x1x96xf32> to vector<1x96xf32>
    %227 = vector.broadcast %226 : vector<1x96xf32> to vector<16x96xf32>
    %228 = arith.addf %224, %227 : vector<16x96xf32>
    %229 = vector.extract_strided_slice %228 {offsets = [0, 0], sizes = [8, 16], strides = [1, 1]} : vector<16x96xf32> to vector<8x16xf32>
    %230 = vector.extract_strided_slice %228 {offsets = [0, 32], sizes = [8, 16], strides = [1, 1]} : vector<16x96xf32> to vector<8x16xf32>
    %231 = vector.extract_strided_slice %228 {offsets = [0, 64], sizes = [8, 16], strides = [1, 1]} : vector<16x96xf32> to vector<8x16xf32>
    %232 = tpu.transpose %230, [1, 0] : vector<8x16xf32> -> vector<16x8xf32>
    %cst_98 = arith.constant dense<0.000000e+00> : vector<8x8xf32>
    %233 = tpu.matmul %229, %232, %cst_98 {dimension_numbers = #tpu.dot_dimension_numbers<[1], [0], [0], [1], [0, 0, 1, 1], [], []>} : vector<8x16xf32>, vector<16x8xf32>, vector<8x8xf32> -> vector<8x8xf32>
    %234 = arith.addf %233, %47 : vector<8x8xf32>
    %cst_99 = arith.constant dense<0xFF800000> : vector<8xf32>
    %235 = vector.multi_reduction <maximumf>, %234, %cst_99 [1] : vector<8x8xf32> to vector<8xf32>
    %236 = vector.shape_cast %235 : vector<8xf32> to vector<8x1xf32>
    %237 = vector.broadcast %236 : vector<8x1xf32> to vector<8x8xf32>
    %238 = arith.subf %234, %237 : vector<8x8xf32>
    %239 = math.exp %238 : vector<8x8xf32>
    %cst_100 = arith.constant dense<0.000000e+00> : vector<8xf32>
    %240 = vector.multi_reduction <add>, %239, %cst_100 [1] : vector<8x8xf32> to vector<8xf32>
    %241 = vector.shape_cast %240 : vector<8xf32> to vector<8x1xf32>
    %242 = tpu.reciprocal %241 {approx = true} : vector<8x1xf32> -> vector<8x1xf32>
    %243 = vector.broadcast %242 : vector<8x1xf32> to vector<8x8xf32>
    %244 = arith.mulf %239, %243 : vector<8x8xf32>
    %cst_101 = arith.constant dense<0.000000e+00> : vector<8x16xf32>
    %245 = tpu.matmul %244, %231, %cst_101 {dimension_numbers = #tpu.dot_dimension_numbers<[1], [0], [0], [1], [0, 0, 1, 1], [], []>} : vector<8x8xf32>, vector<8x16xf32>, vector<8x16xf32> -> vector<8x16xf32>
    %246 = vector.extract_strided_slice %228 {offsets = [0, 16], sizes = [8, 16], strides = [1, 1]} : vector<16x96xf32> to vector<8x16xf32>
    %247 = vector.extract_strided_slice %228 {offsets = [0, 48], sizes = [8, 16], strides = [1, 1]} : vector<16x96xf32> to vector<8x16xf32>
    %248 = vector.extract_strided_slice %228 {offsets = [0, 80], sizes = [8, 16], strides = [1, 1]} : vector<16x96xf32> to vector<8x16xf32>
    %249 = tpu.transpose %247, [1, 0] : vector<8x16xf32> -> vector<16x8xf32>
    %cst_102 = arith.constant dense<0.000000e+00> : vector<8x8xf32>
    %250 = tpu.matmul %246, %249, %cst_102 {dimension_numbers = #tpu.dot_dimension_numbers<[1], [0], [0], [1], [0, 0, 1, 1], [], []>} : vector<8x16xf32>, vector<16x8xf32>, vector<8x8xf32> -> vector<8x8xf32>
    %251 = arith.addf %250, %47 : vector<8x8xf32>
    %cst_103 = arith.constant dense<0xFF800000> : vector<8xf32>
    %252 = vector.multi_reduction <maximumf>, %251, %cst_103 [1] : vector<8x8xf32> to vector<8xf32>
    %253 = vector.shape_cast %252 : vector<8xf32> to vector<8x1xf32>
    %254 = vector.broadcast %253 : vector<8x1xf32> to vector<8x8xf32>
    %255 = arith.subf %251, %254 : vector<8x8xf32>
    %256 = math.exp %255 : vector<8x8xf32>
    %cst_104 = arith.constant dense<0.000000e+00> : vector<8xf32>
    %257 = vector.multi_reduction <add>, %256, %cst_104 [1] : vector<8x8xf32> to vector<8xf32>
    %258 = vector.shape_cast %257 : vector<8xf32> to vector<8x1xf32>
    %259 = tpu.reciprocal %258 {approx = true} : vector<8x1xf32> -> vector<8x1xf32>
    %260 = vector.broadcast %259 : vector<8x1xf32> to vector<8x8xf32>
    %261 = arith.mulf %256, %260 : vector<8x8xf32>
    %cst_105 = arith.constant dense<0.000000e+00> : vector<8x16xf32>
    %262 = tpu.matmul %261, %248, %cst_105 {dimension_numbers = #tpu.dot_dimension_numbers<[1], [0], [0], [1], [0, 0, 1, 1], [], []>} : vector<8x8xf32>, vector<8x16xf32>, vector<8x16xf32> -> vector<8x16xf32>
    %263 = tpu.concatenate %245, %262 in 1 : vector<8x16xf32>, vector<8x16xf32> -> vector<8x32xf32>
    %264 = vector.extract_strided_slice %228 {offsets = [8, 0], sizes = [8, 16], strides = [1, 1]} : vector<16x96xf32> to vector<8x16xf32>
    %265 = vector.extract_strided_slice %228 {offsets = [8, 32], sizes = [8, 16], strides = [1, 1]} : vector<16x96xf32> to vector<8x16xf32>
    %266 = vector.extract_strided_slice %228 {offsets = [8, 64], sizes = [8, 16], strides = [1, 1]} : vector<16x96xf32> to vector<8x16xf32>
    %267 = tpu.transpose %265, [1, 0] : vector<8x16xf32> -> vector<16x8xf32>
    %cst_106 = arith.constant dense<0.000000e+00> : vector<8x8xf32>
    %268 = tpu.matmul %264, %267, %cst_106 {dimension_numbers = #tpu.dot_dimension_numbers<[1], [0], [0], [1], [0, 0, 1, 1], [], []>} : vector<8x16xf32>, vector<16x8xf32>, vector<8x8xf32> -> vector<8x8xf32>
    %269 = arith.addf %268, %50 : vector<8x8xf32>
    %cst_107 = arith.constant dense<0xFF800000> : vector<8xf32>
    %270 = vector.multi_reduction <maximumf>, %269, %cst_107 [1] : vector<8x8xf32> to vector<8xf32>
    %271 = vector.shape_cast %270 : vector<8xf32> to vector<8x1xf32>
    %272 = vector.broadcast %271 : vector<8x1xf32> to vector<8x8xf32>
    %273 = arith.subf %269, %272 : vector<8x8xf32>
    %274 = math.exp %273 : vector<8x8xf32>
    %cst_108 = arith.constant dense<0.000000e+00> : vector<8xf32>
    %275 = vector.multi_reduction <add>, %274, %cst_108 [1] : vector<8x8xf32> to vector<8xf32>
    %276 = vector.shape_cast %275 : vector<8xf32> to vector<8x1xf32>
    %277 = tpu.reciprocal %276 {approx = true} : vector<8x1xf32> -> vector<8x1xf32>
    %278 = vector.broadcast %277 : vector<8x1xf32> to vector<8x8xf32>
    %279 = arith.mulf %274, %278 : vector<8x8xf32>
    %cst_109 = arith.constant dense<0.000000e+00> : vector<8x16xf32>
    %280 = tpu.matmul %279, %266, %cst_109 {dimension_numbers = #tpu.dot_dimension_numbers<[1], [0], [0], [1], [0, 0, 1, 1], [], []>} : vector<8x8xf32>, vector<8x16xf32>, vector<8x16xf32> -> vector<8x16xf32>
    %281 = vector.extract_strided_slice %228 {offsets = [8, 16], sizes = [8, 16], strides = [1, 1]} : vector<16x96xf32> to vector<8x16xf32>
    %282 = vector.extract_strided_slice %228 {offsets = [8, 48], sizes = [8, 16], strides = [1, 1]} : vector<16x96xf32> to vector<8x16xf32>
    %283 = vector.extract_strided_slice %228 {offsets = [8, 80], sizes = [8, 16], strides = [1, 1]} : vector<16x96xf32> to vector<8x16xf32>
    %284 = tpu.transpose %282, [1, 0] : vector<8x16xf32> -> vector<16x8xf32>
    %cst_110 = arith.constant dense<0.000000e+00> : vector<8x8xf32>
    %285 = tpu.matmul %281, %284, %cst_110 {dimension_numbers = #tpu.dot_dimension_numbers<[1], [0], [0], [1], [0, 0, 1, 1], [], []>} : vector<8x16xf32>, vector<16x8xf32>, vector<8x8xf32> -> vector<8x8xf32>
    %286 = arith.addf %285, %50 : vector<8x8xf32>
    %cst_111 = arith.constant dense<0xFF800000> : vector<8xf32>
    %287 = vector.multi_reduction <maximumf>, %286, %cst_111 [1] : vector<8x8xf32> to vector<8xf32>
    %288 = vector.shape_cast %287 : vector<8xf32> to vector<8x1xf32>
    %289 = vector.broadcast %288 : vector<8x1xf32> to vector<8x8xf32>
    %290 = arith.subf %286, %289 : vector<8x8xf32>
    %291 = math.exp %290 : vector<8x8xf32>
    %cst_112 = arith.constant dense<0.000000e+00> : vector<8xf32>
    %292 = vector.multi_reduction <add>, %291, %cst_112 [1] : vector<8x8xf32> to vector<8xf32>
    %293 = vector.shape_cast %292 : vector<8xf32> to vector<8x1xf32>
    %294 = tpu.reciprocal %293 {approx = true} : vector<8x1xf32> -> vector<8x1xf32>
    %295 = vector.broadcast %294 : vector<8x1xf32> to vector<8x8xf32>
    %296 = arith.mulf %291, %295 : vector<8x8xf32>
    %cst_113 = arith.constant dense<0.000000e+00> : vector<8x16xf32>
    %297 = tpu.matmul %296, %283, %cst_113 {dimension_numbers = #tpu.dot_dimension_numbers<[1], [0], [0], [1], [0, 0, 1, 1], [], []>} : vector<8x8xf32>, vector<8x16xf32>, vector<8x16xf32> -> vector<8x16xf32>
    %298 = tpu.concatenate %280, %297 in 1 : vector<8x16xf32>, vector<8x16xf32> -> vector<8x32xf32>
    %299 = tpu.concatenate %263, %298 in 0 : vector<8x32xf32>, vector<8x32xf32> -> vector<16x32xf32>
    %300 = arith.truncf %299 : vector<16x32xf32> to vector<16x32xbf16>
    %c1_114 = arith.constant 1 : index
    %c0_115 = arith.constant 0 : index
    %c0_116 = arith.constant 0 : index
    %301 = vector.load %arg10[%c1_114, %c0_115, %c0_116] : memref<2x32x32xbf16, #tpu.memory_space<vmem>>, vector<1x32x32xbf16>
    %302 = vector.shape_cast %301 : vector<1x32x32xbf16> to vector<32x32xbf16>
    %cst_117 = arith.constant dense<0.000000e+00> : vector<16x32xf32>
    %303 = tpu.matmul %300, %302, %cst_117 {dimension_numbers = #tpu.dot_dimension_numbers<[1], [0], [0], [1], [0, 0, 1, 1], [], []>} : vector<16x32xbf16>, vector<32x32xbf16>, vector<16x32xf32> -> vector<16x32xf32>
    %c1_118 = arith.constant 1 : index
    %c0_119 = arith.constant 0 : index
    %c0_120 = arith.constant 0 : index
    %304 = vector.load %arg11[%c1_118, %c0_119, %c0_120] : memref<2x1x32xf32, #tpu.memory_space<vmem>>, vector<1x1x32xf32>
    %305 = vector.shape_cast %304 : vector<1x1x32xf32> to vector<1x32xf32>
    %306 = vector.broadcast %305 : vector<1x32xf32> to vector<16x32xf32>
    %307 = arith.addf %303, %306 : vector<16x32xf32>
    %308 = arith.addf %220, %307 : vector<16x32xf32>
    %c1_121 = arith.constant 1 : index
    %c0_122 = arith.constant 0 : index
    %c0_123 = arith.constant 0 : index
    %309 = vector.load %arg12[%c1_121, %c0_122, %c0_123] : memref<2x1x32xf32, #tpu.memory_space<vmem>>, vector<1x1x32xf32>
    %310 = vector.shape_cast %309 : vector<1x1x32xf32> to vector<1x32xf32>
    %c1_124 = arith.constant 1 : index
    %c0_125 = arith.constant 0 : index
    %c0_126 = arith.constant 0 : index
    %311 = vector.load %arg13[%c1_124, %c0_125, %c0_126] : memref<2x1x32xf32, #tpu.memory_space<vmem>>, vector<1x1x32xf32>
    %312 = vector.shape_cast %311 : vector<1x1x32xf32> to vector<1x32xf32>
    %cst_127 = arith.constant dense<0.000000e+00> : vector<16xf32>
    %313 = vector.multi_reduction <add>, %308, %cst_127 [1] : vector<16x32xf32> to vector<16xf32>
    %314 = vector.shape_cast %313 : vector<16xf32> to vector<16x1xf32>
    %cst_128 = arith.constant 3.200000e+01 : f32
    %315 = vector.broadcast %cst_128 : f32 to vector<16x1xf32>
    %316 = arith.divf %314, %315 : vector<16x1xf32>
    %317 = vector.broadcast %316 : vector<16x1xf32> to vector<16x32xf32>
    %318 = arith.subf %308, %317 : vector<16x32xf32>
    %319 = arith.mulf %318, %318 : vector<16x32xf32>
    %cst_129 = arith.constant dense<0.000000e+00> : vector<16xf32>
    %320 = vector.multi_reduction <add>, %319, %cst_129 [1] : vector<16x32xf32> to vector<16xf32>
    %321 = vector.shape_cast %320 : vector<16xf32> to vector<16x1xf32>
    %cst_130 = arith.constant 3.200000e+01 : f32
    %322 = vector.broadcast %cst_130 : f32 to vector<16x1xf32>
    %323 = arith.divf %321, %322 : vector<16x1xf32>
    %324 = vector.broadcast %316 : vector<16x1xf32> to vector<16x32xf32>
    %325 = arith.subf %308, %324 : vector<16x32xf32>
    %cst_131 = arith.constant 9.99999996E-13 : f32
    %326 = vector.broadcast %cst_131 : f32 to vector<16x1xf32>
    %327 = arith.addf %323, %326 : vector<16x1xf32>
    %328 = math.rsqrt %327 : vector<16x1xf32>
    %329 = vector.broadcast %328 : vector<16x1xf32> to vector<16x32xf32>
    %330 = arith.mulf %325, %329 : vector<16x32xf32>
    %331 = vector.broadcast %310 : vector<1x32xf32> to vector<16x32xf32>
    %332 = arith.mulf %330, %331 : vector<16x32xf32>
    %333 = vector.broadcast %312 : vector<1x32xf32> to vector<16x32xf32>
    %334 = arith.addf %332, %333 : vector<16x32xf32>
    %335 = arith.truncf %334 : vector<16x32xf32> to vector<16x32xbf16>
    %c1_132 = arith.constant 1 : index
    %c0_133 = arith.constant 0 : index
    %c0_134 = arith.constant 0 : index
    %336 = vector.load %arg14[%c1_132, %c0_133, %c0_134] : memref<2x32x64xbf16, #tpu.memory_space<vmem>>, vector<1x32x64xbf16>
    %337 = vector.shape_cast %336 : vector<1x32x64xbf16> to vector<32x64xbf16>
    %cst_135 = arith.constant dense<0.000000e+00> : vector<16x64xf32>
    %338 = tpu.matmul %335, %337, %cst_135 {dimension_numbers = #tpu.dot_dimension_numbers<[1], [0], [0], [1], [0, 0, 1, 1], [], []>} : vector<16x32xbf16>, vector<32x64xbf16>, vector<16x64xf32> -> vector<16x64xf32>
    %c1_136 = arith.constant 1 : index
    %c0_137 = arith.constant 0 : index
    %c0_138 = arith.constant 0 : index
    %339 = vector.load %arg15[%c1_136, %c0_137, %c0_138] : memref<2x1x64xf32, #tpu.memory_space<vmem>>, vector<1x1x64xf32>
    %340 = vector.shape_cast %339 : vector<1x1x64xf32> to vector<1x64xf32>
    %341 = vector.broadcast %340 : vector<1x64xf32> to vector<16x64xf32>
    %342 = arith.addf %338, %341 : vector<16x64xf32>
    %cst_139 = arith.constant 5.000000e-01 : f32
    %343 = vector.broadcast %cst_139 : f32 to vector<16x64xf32>
    %344 = arith.mulf %343, %342 : vector<16x64xf32>
    %cst_140 = arith.constant 4.471500e-02 : f32
    %345 = vector.broadcast %cst_140 : f32 to vector<16x64xf32>
    %346 = arith.mulf %345, %342 : vector<16x64xf32>
    %347 = arith.mulf %346, %342 : vector<16x64xf32>
    %348 = arith.mulf %347, %342 : vector<16x64xf32>
    %349 = arith.addf %342, %348 : vector<16x64xf32>
    %cst_141 = arith.constant 0.797884583 : f32
    %350 = vector.broadcast %cst_141 : f32 to vector<16x64xf32>
    %351 = arith.mulf %350, %349 : vector<16x64xf32>
    %352 = math.tanh %351 : vector<16x64xf32>
    %cst_142 = arith.constant 1.000000e+00 : f32
    %353 = vector.broadcast %cst_142 : f32 to vector<16x64xf32>
    %354 = arith.addf %353, %352 : vector<16x64xf32>
    %355 = arith.mulf %344, %354 : vector<16x64xf32>
    %356 = arith.truncf %355 : vector<16x64xf32> to vector<16x64xbf16>
    %c1_143 = arith.constant 1 : index
    %c0_144 = arith.constant 0 : index
    %c0_145 = arith.constant 0 : index
    %357 = vector.load %arg16[%c1_143, %c0_144, %c0_145] : memref<2x64x32xbf16, #tpu.memory_space<vmem>>, vector<1x64x32xbf16>
    %358 = vector.shape_cast %357 : vector<1x64x32xbf16> to vector<64x32xbf16>
    %cst_146 = arith.constant dense<0.000000e+00> : vector<16x32xf32>
    %359 = tpu.matmul %356, %358, %cst_146 {dimension_numbers = #tpu.dot_dimension_numbers<[1], [0], [0], [1], [0, 0, 1, 1], [], []>} : vector<16x64xbf16>, vector<64x32xbf16>, vector<16x32xf32> -> vector<16x32xf32>
    %c1_147 = arith.constant 1 : index
    %c0_148 = arith.constant 0 : index
    %c0_149 = arith.constant 0 : index
    %360 = vector.load %arg17[%c1_147, %c0_148, %c0_149] : memref<2x1x32xf32, #tpu.memory_space<vmem>>, vector<1x1x32xf32>
    %361 = vector.shape_cast %360 : vector<1x1x32xf32> to vector<1x32xf32>
    %362 = vector.broadcast %361 : vector<1x32xf32> to vector<16x32xf32>
    %363 = arith.addf %359, %362 : vector<16x32xf32>
    %364 = arith.addf %334, %363 : vector<16x32xf32>
    %c1_150 = arith.constant 1 : index
    %c0_151 = arith.constant 0 : index
    %c0_152 = arith.constant 0 : index
    %365 = vector.load %arg18[%c1_150, %c0_151, %c0_152] : memref<2x1x32xf32, #tpu.memory_space<vmem>>, vector<1x1x32xf32>
    %366 = vector.shape_cast %365 : vector<1x1x32xf32> to vector<1x32xf32>
    %c1_153 = arith.constant 1 : index
    %c0_154 = arith.constant 0 : index
    %c0_155 = arith.constant 0 : index
    %367 = vector.load %arg19[%c1_153, %c0_154, %c0_155] : memref<2x1x32xf32, #tpu.memory_space<vmem>>, vector<1x1x32xf32>
    %368 = vector.shape_cast %367 : vector<1x1x32xf32> to vector<1x32xf32>
    %cst_156 = arith.constant dense<0.000000e+00> : vector<16xf32>
    %369 = vector.multi_reduction <add>, %364, %cst_156 [1] : vector<16x32xf32> to vector<16xf32>
    %370 = vector.shape_cast %369 : vector<16xf32> to vector<16x1xf32>
    %cst_157 = arith.constant 3.200000e+01 : f32
    %371 = vector.broadcast %cst_157 : f32 to vector<16x1xf32>
    %372 = arith.divf %370, %371 : vector<16x1xf32>
    %373 = vector.broadcast %372 : vector<16x1xf32> to vector<16x32xf32>
    %374 = arith.subf %364, %373 : vector<16x32xf32>
    %375 = arith.mulf %374, %374 : vector<16x32xf32>
    %cst_158 = arith.constant dense<0.000000e+00> : vector<16xf32>
    %376 = vector.multi_reduction <add>, %375, %cst_158 [1] : vector<16x32xf32> to vector<16xf32>
    %377 = vector.shape_cast %376 : vector<16xf32> to vector<16x1xf32>
    %cst_159 = arith.constant 3.200000e+01 : f32
    %378 = vector.broadcast %cst_159 : f32 to vector<16x1xf32>
    %379 = arith.divf %377, %378 : vector<16x1xf32>
    %380 = vector.broadcast %372 : vector<16x1xf32> to vector<16x32xf32>
    %381 = arith.subf %364, %380 : vector<16x32xf32>
    %cst_160 = arith.constant 9.99999996E-13 : f32
    %382 = vector.broadcast %cst_160 : f32 to vector<16x1xf32>
    %383 = arith.addf %379, %382 : vector<16x1xf32>
    %384 = math.rsqrt %383 : vector<16x1xf32>
    %385 = vector.broadcast %384 : vector<16x1xf32> to vector<16x32xf32>
    %386 = arith.mulf %381, %385 : vector<16x32xf32>
    %387 = vector.broadcast %366 : vector<1x32xf32> to vector<16x32xf32>
    %388 = arith.mulf %386, %387 : vector<16x32xf32>
    %389 = vector.broadcast %368 : vector<1x32xf32> to vector<16x32xf32>
    %390 = arith.addf %388, %389 : vector<16x32xf32>
    %391 = vector.extract_strided_slice %390 {offsets = [0, 0], sizes = [1, 32], strides = [1, 1]} : vector<16x32xf32> to vector<1x32xf32>
    %392 = vector.extract_strided_slice %390 {offsets = [8, 0], sizes = [1, 32], strides = [1, 1]} : vector<16x32xf32> to vector<1x32xf32>
    %393 = tpu.concatenate %391, %392 in 0 : vector<1x32xf32>, vector<1x32xf32> -> vector<2x32xf32>
    %394 = arith.truncf %393 : vector<2x32xf32> to vector<2x32xbf16>
    %c0_161 = arith.constant 0 : index
    %c0_162 = arith.constant 0 : index
    %395 = vector.load %arg20[%c0_161, %c0_162] : memref<32x32xbf16, #tpu.memory_space<vmem>>, vector<32x32xbf16>
    %cst_163 = arith.constant dense<0.000000e+00> : vector<2x32xf32>
    %396 = tpu.matmul %394, %395, %cst_163 {dimension_numbers = #tpu.dot_dimension_numbers<[1], [0], [0], [1], [0, 0, 1, 1], [], []>} : vector<2x32xbf16>, vector<32x32xbf16>, vector<2x32xf32> -> vector<2x32xf32>
    %c0_164 = arith.constant 0 : index
    %c0_165 = arith.constant 0 : index
    %397 = vector.load %arg21[%c0_164, %c0_165] : memref<1x32xf32, #tpu.memory_space<vmem>>, vector<1x32xf32>
    %398 = vector.broadcast %397 : vector<1x32xf32> to vector<2x32xf32>
    %399 = arith.addf %396, %398 : vector<2x32xf32>
    %400 = math.tanh %399 : vector<2x32xf32>
    %401 = arith.truncf %400 : vector<2x32xf32> to vector<2x32xbf16>
    %c0_166 = arith.constant 0 : index
    %c0_167 = arith.constant 0 : index
    %402 = vector.load %arg22[%c0_166, %c0_167] : memref<32x128xbf16, #tpu.memory_space<vmem>>, vector<32x128xbf16>
    %cst_168 = arith.constant dense<0.000000e+00> : vector<2x128xf32>
    %403 = tpu.matmul %401, %402, %cst_168 {dimension_numbers = #tpu.dot_dimension_numbers<[1], [0], [0], [1], [0, 0, 1, 1], [], []>} : vector<2x32xbf16>, vector<32x128xbf16>, vector<2x128xf32> -> vector<2x128xf32>
    %c0_169 = arith.constant 0 : index
    %c0_170 = arith.constant 0 : index
    %404 = vector.load %arg23[%c0_169, %c0_170] : memref<1x128xf32, #tpu.memory_space<vmem>>, vector<1x128xf32>
    %405 = vector.broadcast %404 : vector<1x128xf32> to vector<2x128xf32>
    %406 = arith.addf %403, %405 : vector<2x128xf32>
    %cst_171 = arith.constant dense<0xFF800000> : vector<2xf32>
    %407 = vector.multi_reduction <maximumf>, %406, %cst_171 [1] : vector<2x128xf32> to vector<2xf32>
    %408 = vector.shape_cast %407 : vector<2xf32> to vector<2x1xf32>
    %409 = vector.broadcast %408 : vector<2x1xf32> to vector<2x128xf32>
    %410 = arith.subf %406, %409 : vector<2x128xf32>
    %411 = math.exp %410 : vector<2x128xf32>
    %cst_172 = arith.constant dense<0.000000e+00> : vector<2xf32>
    %412 = vector.multi_reduction <add>, %411, %cst_172 [1] : vector<2x128xf32> to vector<2xf32>
    %413 = vector.shape_cast %412 : vector<2xf32> to vector<2x1xf32>
    %414 = vector.broadcast %413 : vector<2x1xf32> to vector<2x128xf32>
    %415 = arith.divf %411, %414 : vector<2x128xf32>
    %c0_173 = arith.constant 0 : index
    %c0_174 = arith.constant 0 : index
    %416 = vector.load %arg24[%c0_173, %c0_174] : memref<2x128xf32, #tpu.memory_space<vmem>>, vector<2x128xf32>
    tpu.vector_store %arg24[%c0_173, %c0_174], %415 {strides = array<i32>} : memref<2x128xf32, #tpu.memory_space<vmem>>, vector<2x128xf32>,
    return
  }
  func.func @transform_0(%arg0: i32) -> (i32, i32) {
    %c0_i32 = arith.constant 0 : i32
    %c0_i32_0 = arith.constant 0 : i32
    return %arg0, %c0_i32 : i32, i32
  }
  func.func @transform_1(%arg0: i32) -> (i32, i32) {
    %c0_i32 = arith.constant 0 : i32
    %c0_i32_0 = arith.constant 0 : i32
    return %arg0, %c0_i32 : i32, i32
  }
  func.func @transform_2(%arg0: i32) -> (i32, i32) {
    %c0_i32 = arith.constant 0 : i32
    %c0_i32_0 = arith.constant 0 : i32
    %c0_i32_1 = arith.constant 0 : i32
    return %c0_i32, %c0_i32_0 : i32, i32
  }
  func.func @transform_3(%arg0: i32) -> (i32, i32) {
    %c0_i32 = arith.constant 0 : i32
    %c0_i32_0 = arith.constant 0 : i32
    %c0_i32_1 = arith.constant 0 : i32
    return %c0_i32, %c0_i32_0 : i32, i32
  }
  func.func @transform_4(%arg0: i32) -> (i32, i32) {
    %c0_i32 = arith.constant 0 : i32
    %c0_i32_0 = arith.constant 0 : i32
    %c0_i32_1 = arith.constant 0 : i32
    return %c0_i32, %c0_i32_0 : i32, i32
  }
  func.func @transform_5(%arg0: i32) -> (i32, i32) {
    %c0_i32 = arith.constant 0 : i32
    %c0_i32_0 = arith.constant 0 : i32
    %c0_i32_1 = arith.constant 0 : i32
    return %c0_i32, %c0_i32_0 : i32, i32
  }
  func.func @transform_6(%arg0: i32) -> (i32, i32) {
    %c0_i32 = arith.constant 0 : i32
    %c0_i32_0 = arith.constant 0 : i32
    %c0_i32_1 = arith.constant 0 : i32
    return %c0_i32, %c0_i32_0 : i32, i32
  }
  func.func @transform_7(%arg0: i32) -> (i32, i32, i32) {
    %c0_i32 = arith.constant 0 : i32
    %c0_i32_0 = arith.constant 0 : i32
    %c0_i32_1 = arith.constant 0 : i32
    %c0_i32_2 = arith.constant 0 : i32
    return %c0_i32, %c0_i32_0, %c0_i32_1 : i32, i32, i32
  }
  func.func @transform_8(%arg0: i32) -> (i32, i32, i32) {
    %c0_i32 = arith.constant 0 : i32
    %c0_i32_0 = arith.constant 0 : i32
    %c0_i32_1 = arith.constant 0 : i32
    %c0_i32_2 = arith.constant 0 : i32
    return %c0_i32, %c0_i32_0, %c0_i32_1 : i32, i32, i32
  }
  func.func @transform_9(%arg0: i32) -> (i32, i32, i32) {
    %c0_i32 = arith.constant 0 : i32
    %c0_i32_0 = arith.constant 0 : i32
    %c0_i32_1 = arith.constant 0 : i32
    %c0_i32_2 = arith.constant 0 : i32
    return %c0_i32, %c0_i32_0, %c0_i32_1 : i32, i32, i32
  }
  func.func @transform_10(%arg0: i32) -> (i32, i32, i32) {
    %c0_i32 = arith.constant 0 : i32
    %c0_i32_0 = arith.constant 0 : i32
    %c0_i32_1 = arith.constant 0 : i32
    %c0_i32_2 = arith.constant 0 : i32
    return %c0_i32, %c0_i32_0, %c0_i32_1 : i32, i32, i32
  }
  func.func @transform_11(%arg0: i32) -> (i32, i32, i32) {
    %c0_i32 = arith.constant 0 : i32
    %c0_i32_0 = arith.constant 0 : i32
    %c0_i32_1 = arith.constant 0 : i32
    %c0_i32_2 = arith.constant 0 : i32
    return %c0_i32, %c0_i32_0, %c0_i32_1 : i32, i32, i32
  }
  func.func @transform_12(%arg0: i32) -> (i32, i32, i32) {
    %c0_i32 = arith.constant 0 : i32
    %c0_i32_0 = arith.constant 0 : i32
    %c0_i32_1 = arith.constant 0 : i32
    %c0_i32_2 = arith.constant 0 : i32
    return %c0_i32, %c0_i32_0, %c0_i32_1 : i32, i32, i32
  }
  func.func @transform_13(%arg0: i32) -> (i32, i32, i32) {
    %c0_i32 = arith.constant 0 : i32
    %c0_i32_0 = arith.constant 0 : i32
    %c0_i32_1 = arith.constant 0 : i32
    %c0_i32_2 = arith.constant 0 : i32
    return %c0_i32, %c0_i32_0, %c0_i32_1 : i32, i32, i32
  }
  func.func @transform_14(%arg0: i32) -> (i32, i32, i32) {
    %c0_i32 = arith.constant 0 : i32
    %c0_i32_0 = arith.constant 0 : i32
    %c0_i32_1 = arith.constant 0 : i32
    %c0_i32_2 = arith.constant 0 : i32
    return %c0_i32, %c0_i32_0, %c0_i32_1 : i32, i32, i32
  }
  func.func @transform_15(%arg0: i32) -> (i32, i32, i32) {
    %c0_i32 = arith.constant 0 : i32
    %c0_i32_0 = arith.constant 0 : i32
    %c0_i32_1 = arith.constant 0 : i32
    %c0_i32_2 = arith.constant 0 : i32
    return %c0_i32, %c0_i32_0, %c0_i32_1 : i32, i32, i32
  }
  func.func @transform_16(%arg0: i32) -> (i32, i32, i32) {
    %c0_i32 = arith.constant 0 : i32
    %c0_i32_0 = arith.constant 0 : i32
    %c0_i32_1 = arith.constant 0 : i32
    %c0_i32_2 = arith.constant 0 : i32
    return %c0_i32, %c0_i32_0, %c0_i32_1 : i32, i32, i32
  }
  func.func @transform_17(%arg0: i32) -> (i32, i32, i32) {
    %c0_i32 = arith.constant 0 : i32
    %c0_i32_0 = arith.constant 0 : i32
    %c0_i32_1 = arith.constant 0 : i32
    %c0_i32_2 = arith.constant 0 : i32
    return %c0_i32, %c0_i32_0, %c0_i32_1 : i32, i32, i32
  }
  func.func @transform_18(%arg0: i32) -> (i32, i32, i32) {
    %c0_i32 = arith.constant 0 : i32
    %c0_i32_0 = arith.constant 0 : i32
    %c0_i32_1 = arith.constant 0 : i32
    %c0_i32_2 = arith.constant 0 : i32
    return %c0_i32, %c0_i32_0, %c0_i32_1 : i32, i32, i32
  }
  func.func @transform_19(%arg0: i32) -> (i32, i32) {
    %c0_i32 = arith.constant 0 : i32
    %c0_i32_0 = arith.constant 0 : i32
    %c0_i32_1 = arith.constant 0 : i32
    return %c0_i32, %c0_i32_0 : i32, i32
  }
  func.func @transform_20(%arg0: i32) -> (i32, i32) {
    %c0_i32 = arith.constant 0 : i32
    %c0_i32_0 = arith.constant 0 : i32
    %c0_i32_1 = arith.constant 0 : i32
    return %c0_i32, %c0_i32_0 : i32, i32
  }
  func.func @transform_21(%arg0: i32) -> (i32, i32) {
    %c0_i32 = arith.constant 0 : i32
    %c0_i32_0 = arith.constant 0 : i32
    %c0_i32_1 = arith.constant 0 : i32
    return %c0_i32, %c0_i32_0 : i32, i32
  }
  func.func @transform_22(%arg0: i32) -> (i32, i32) {
    %c0_i32 = arith.constant 0 : i32
    %c0_i32_0 = arith.constant 0 : i32
    %c0_i32_1 = arith.constant 0 : i32
    return %c0_i32, %c0_i32_0 : i32, i32
  }
  func.func @transform_23(%arg0: i32) -> (i32, i32) {
    %c0_i32 = arith.constant 0 : i32
    %c0_i32_0 = arith.constant 0 : i32
    return %arg0, %c0_i32 : i32, i32
  }
}

</mosaic_0001>

<llo_original>
// kernel: bert_sentiment_classifier.1
$region0: #{bert_sentiment_classifier.1}
  #allocation0 [shape = 'u32[]', space=smem, size = 0x4, offset = 0x4, fixed_abs, tag = 'smem constant byte address 0x4 - core index']
  #allocation1 [shape = 'u32[72,128]{1,0:T(1,128)}', space=vmem, size = 0x9000, scoped, tag = 'internal scratch']
  %s0 = inlined_call_operand.vmem [shape: s32[16,1], index: 0, kind: input, shape index: {}]
  %s1 = inlined_call_operand.vmem [shape: f32[2,8], index: 1, kind: input, shape index: {}]
  %s2 = inlined_call_operand.vmem [shape: bf16[128,32], index: 2, kind: input, shape index: {}]
  %s3 = inlined_call_operand.vmem [shape: f32[8,32], index: 3, kind: input, shape index: {}]
  %s4 = inlined_call_operand.vmem [shape: f32[1,32], index: 4, kind: input, shape index: {}]
  %s5 = inlined_call_operand.vmem [shape: f32[1,32], index: 5, kind: input, shape index: {}]
  %s6 = inlined_call_operand.vmem [shape: f32[1,32], index: 6, kind: input, shape index: {}]
  %s7 = inlined_call_operand.vmem [shape: bf16[2,32,96], index: 7, kind: input, shape index: {}]
  %s8 = inlined_call_operand.vmem [shape: f32[2,1,96], index: 8, kind: input, shape index: {}]
  %s9 = inlined_call_operand.vmem [shape: bf16[2,32,32], index: 9, kind: input, shape index: {}]
  %s10 = inlined_call_operand.vmem [shape: f32[2,1,32], index: 10, kind: input, shape index: {}]
  %s11 = inlined_call_operand.vmem [shape: f32[2,1,32], index: 11, kind: input, shape index: {}]
  %s12 = inlined_call_operand.vmem [shape: f32[2,1,32], index: 12, kind: input, shape index: {}]
  %s13 = inlined_call_operand.vmem [shape: bf16[2,32,64], index: 13, kind: input, shape index: {}]
  %s14 = inlined_call_operand.vmem [shape: f32[2,1,64], index: 14, kind: input, shape index: {}]
  %s15 = inlined_call_operand.vmem [shape: bf16[2,64,32], index: 15, kind: input, shape index: {}]
  %s16 = inlined_call_operand.vmem [shape: f32[2,1,32], index: 16, kind: input, shape index: {}]
  %s17 = inlined_call_operand.vmem [shape: f32[2,1,32], index: 17, kind: input, shape index: {}]
  %s18 = inlined_call_operand.vmem [shape: f32[2,1,32], index: 18, kind: input, shape index: {}]
  %s19 = inlined_call_operand.vmem [shape: bf16[32,32], index: 19, kind: input, shape index: {}]
  %s20 = inlined_call_operand.vmem [shape: f32[1,32], index: 20, kind: input, shape index: {}]
  %s21 = inlined_call_operand.vmem [shape: bf16[32,128], index: 21, kind: input, shape index: {}]
  %s22 = inlined_call_operand.vmem [shape: f32[1,128], index: 22, kind: input, shape index: {}]
  %s23 = inlined_call_operand.hbm [shape: f32[2,128], index: 23, kind: output, shape index: {}]
  %s24 = sld [smem:[#allocation0]]
  $region102: #{bert_sentiment_classifier.1} parent=0
    _
  %s26 = ssub.s32 1, %s24
  %s27 = scalar_select 0, %s26, %s24
  $region1: #{bert_sentiment_classifier.1} parent=0
    #allocation2 [shape = 'u8[1024]{0}', space=vmem, size = 0x400, scoped, tag = 'output window, operand 0, single buffered']
    #allocation3 [shape = 's32[1]{0}', space=sflag, size = 0x4, scoped, tag = 'scoped memory for bert_sentiment_classifier.1']
    %28 = vsyncpa [#allocation3], 0
    // Predicated region
    $region2: #{bert_sentiment_classifier.1} parent=1 // pred_check
      _
    $region3: #{bert_sentiment_classifier.1} parent=1 // pred_check_branch
      %30 = sbr.rel (0) target = $region5
    $region4: #{bert_sentiment_classifier.1} parent=1 // pred_region
      _
    $region5: #{bert_sentiment_classifier.1} parent=1 // pred_fallthru
      _
    // Predicated region
    $region6: #{bert_sentiment_classifier.1} parent=1 // pred_check
      _
    $region7: #{bert_sentiment_classifier.1} parent=1 // pred_check_branch
      %32 = sbr.rel (0) target = $region9
    $region8: #{bert_sentiment_classifier.1} parent=1 // pred_region
      _
    $region9: #{bert_sentiment_classifier.1} parent=1 // pred_fallthru
      _
    // Predicated region
    $region10: #{bert_sentiment_classifier.1} parent=1 // pred_check
      _
    $region11: #{bert_sentiment_classifier.1} parent=1 // pred_check_branch
      %34 = sbr.rel (0) target = $region13
    $region12: #{bert_sentiment_classifier.1} parent=1 // pred_region
      _
    $region13: #{bert_sentiment_classifier.1} parent=1 // pred_fallthru
      _
    // Predicated region
    $region14: #{bert_sentiment_classifier.1} parent=1 // pred_check
      _
    $region15: #{bert_sentiment_classifier.1} parent=1 // pred_check_branch
      %36 = sbr.rel (0) target = $region17
    $region16: #{bert_sentiment_classifier.1} parent=1 // pred_region
      _
    $region17: #{bert_sentiment_classifier.1} parent=1 // pred_fallthru
      _
    // Predicated region
    $region18: #{bert_sentiment_classifier.1} parent=1 // pred_check
      _
    $region19: #{bert_sentiment_classifier.1} parent=1 // pred_check_branch
      %38 = sbr.rel (0) target = $region21
    $region20: #{bert_sentiment_classifier.1} parent=1 // pred_region
      _
    $region21: #{bert_sentiment_classifier.1} parent=1 // pred_fallthru
      _
    // Predicated region
    $region22: #{bert_sentiment_classifier.1} parent=1 // pred_check
      _
    $region23: #{bert_sentiment_classifier.1} parent=1 // pred_check_branch
      %40 = sbr.rel (0) target = $region25
    $region24: #{bert_sentiment_classifier.1} parent=1 // pred_region
      _
    $region25: #{bert_sentiment_classifier.1} parent=1 // pred_fallthru
      _
    // Predicated region
    $region26: #{bert_sentiment_classifier.1} parent=1 // pred_check
      _
    $region27: #{bert_sentiment_classifier.1} parent=1 // pred_check_branch
      %42 = sbr.rel (0) target = $region29
    $region28: #{bert_sentiment_classifier.1} parent=1 // pred_region
      _
    $region29: #{bert_sentiment_classifier.1} parent=1 // pred_fallthru
      _
    // Predicated region
    $region30: #{bert_sentiment_classifier.1} parent=1 // pred_check
      _
    $region31: #{bert_sentiment_classifier.1} parent=1 // pred_check_branch
      %44 = sbr.rel (0) target = $region33
    $region32: #{bert_sentiment_classifier.1} parent=1 // pred_region
      _
    $region33: #{bert_sentiment_classifier.1} parent=1 // pred_fallthru
      _
    // Predicated region
    $region34: #{bert_sentiment_classifier.1} parent=1 // pred_check
      _
    $region35: #{bert_sentiment_classifier.1} parent=1 // pred_check_branch
      %46 = sbr.rel (0) target = $region37
    $region36: #{bert_sentiment_classifier.1} parent=1 // pred_region
      _
    $region37: #{bert_sentiment_classifier.1} parent=1 // pred_fallthru
      _
    // Predicated region
    $region38: #{bert_sentiment_classifier.1} parent=1 // pred_check
      _
    $region39: #{bert_sentiment_classifier.1} parent=1 // pred_check_branch
      %48 = sbr.rel (0) target = $region41
    $region40: #{bert_sentiment_classifier.1} parent=1 // pred_region
      _
    $region41: #{bert_sentiment_classifier.1} parent=1 // pred_fallthru
      _
    // Predicated region
    $region42: #{bert_sentiment_classifier.1} parent=1 // pred_check
      _
    $region43: #{bert_sentiment_classifier.1} parent=1 // pred_check_branch
      %50 = sbr.rel (0) target = $region45
    $region44: #{bert_sentiment_classifier.1} parent=1 // pred_region
      _
    $region45: #{bert_sentiment_classifier.1} parent=1 // pred_fallthru
      _
    // Predicated region
    $region46: #{bert_sentiment_classifier.1} parent=1 // pred_check
      _
    $region47: #{bert_sentiment_classifier.1} parent=1 // pred_check_branch
      %52 = sbr.rel (0) target = $region49
    $region48: #{bert_sentiment_classifier.1} parent=1 // pred_region
      _
    $region49: #{bert_sentiment_classifier.1} parent=1 // pred_fallthru
      _
    // Predicated region
    $region50: #{bert_sentiment_classifier.1} parent=1 // pred_check
      _
    $region51: #{bert_sentiment_classifier.1} parent=1 // pred_check_branch
      %54 = sbr.rel (0) target = $region53
    $region52: #{bert_sentiment_classifier.1} parent=1 // pred_region
      _
    $region53: #{bert_sentiment_classifier.1} parent=1 // pred_fallthru
      _
    // Predicated region
    $region54: #{bert_sentiment_classifier.1} parent=1 // pred_check
      _
    $region55: #{bert_sentiment_classifier.1} parent=1 // pred_check_branch
      %56 = sbr.rel (0) target = $region57
    $region56: #{bert_sentiment_classifier.1} parent=1 // pred_region
      _
    $region57: #{bert_sentiment_classifier.1} parent=1 // pred_fallthru
      _
    // Predicated region
    $region58: #{bert_sentiment_classifier.1} parent=1 // pred_check
      _
    $region59: #{bert_sentiment_classifier.1} parent=1 // pred_check_branch
      %58 = sbr.rel (0) target = $region61
    $region60: #{bert_sentiment_classifier.1} parent=1 // pred_region
      _
    $region61: #{bert_sentiment_classifier.1} parent=1 // pred_fallthru
      _
    // Predicated region
    $region62: #{bert_sentiment_classifier.1} parent=1 // pred_check
      _
    $region63: #{bert_sentiment_classifier.1} parent=1 // pred_check_branch
      %60 = sbr.rel (0) target = $region65
    $region64: #{bert_sentiment_classifier.1} parent=1 // pred_region
      _
    $region65: #{bert_sentiment_classifier.1} parent=1 // pred_fallthru
      _
    // Predicated region
    $region66: #{bert_sentiment_classifier.1} parent=1 // pred_check
      _
    $region67: #{bert_sentiment_classifier.1} parent=1 // pred_check_branch
      %62 = sbr.rel (0) target = $region69
    $region68: #{bert_sentiment_classifier.1} parent=1 // pred_region
      _
    $region69: #{bert_sentiment_classifier.1} parent=1 // pred_fallthru
      _
    // Predicated region
    $region70: #{bert_sentiment_classifier.1} parent=1 // pred_check
      _
    $region71: #{bert_sentiment_classifier.1} parent=1 // pred_check_branch
      %64 = sbr.rel (0) target = $region73
    $region72: #{bert_sentiment_classifier.1} parent=1 // pred_region
      _
    $region73: #{bert_sentiment_classifier.1} parent=1 // pred_fallthru
      _
    // Predicated region
    $region74: #{bert_sentiment_classifier.1} parent=1 // pred_check
      _
    $region75: #{bert_sentiment_classifier.1} parent=1 // pred_check_branch
      %66 = sbr.rel (0) target = $region77
    $region76: #{bert_sentiment_classifier.1} parent=1 // pred_region
      _
    $region77: #{bert_sentiment_classifier.1} parent=1 // pred_fallthru
      _
    // Predicated region
    $region78: #{bert_sentiment_classifier.1} parent=1 // pred_check
      _
    $region79: #{bert_sentiment_classifier.1} parent=1 // pred_check_branch
      %68 = sbr.rel (0) target = $region81
    $region80: #{bert_sentiment_classifier.1} parent=1 // pred_region
      _
    $region81: #{bert_sentiment_classifier.1} parent=1 // pred_fallthru
      _
    // Predicated region
    $region82: #{bert_sentiment_classifier.1} parent=1 // pred_check
      _
    $region83: #{bert_sentiment_classifier.1} parent=1 // pred_check_branch
      %70 = sbr.rel (0) target = $region85
    $region84: #{bert_sentiment_classifier.1} parent=1 // pred_region
      _
    $region85: #{bert_sentiment_classifier.1} parent=1 // pred_fallthru
      _
    // Predicated region
    $region86: #{bert_sentiment_classifier.1} parent=1 // pred_check
      _
    $region87: #{bert_sentiment_classifier.1} parent=1 // pred_check_branch
      %72 = sbr.rel (0) target = $region89
    $region88: #{bert_sentiment_classifier.1} parent=1 // pred_region
      _
    $region89: #{bert_sentiment_classifier.1} parent=1 // pred_fallthru
      _
    // Predicated region
    $region90: #{bert_sentiment_classifier.1} parent=1 // pred_check
      _
    $region91: #{bert_sentiment_classifier.1} parent=1 // pred_check_branch
      %74 = sbr.rel (0) target = $region93
    $region92: #{bert_sentiment_classifier.1} parent=1 // pred_region
      _
    $region93: #{bert_sentiment_classifier.1} parent=1 // pred_fallthru
      _
    %v76 = vld [vmem:[%s0] sm:$0xff]
    %v77 = vld [vmem:[%s0 + $0x8] sm:$0xff]
    %v78 = vlaneseq
    %v79 = vand.u32 %v78, 127
    %80 = vset.pattern.permute.xlu0 0
    %81 = vperm.xlu0 %80, %v76
    %v82 = vpop.permute.xlu0 %81
    %83 = vset.pattern.permute.xlu0 0
    %84 = vperm.xlu0 %83, %v77
    %v85 = vpop.permute.xlu0 %84
    %vm86 = vcmp.eq.s32.totalorder %v79, %v82
    %vm87 = vcmp.eq.s32.totalorder %v79, %v85
    %v88 = vsel %vm86, 1.0, 0.0
    %v89 = vsel %vm87, 1.0, 0.0
    %v90 = vpack.c.bf16 %v89, %v88
    %v91 = vld [vmem:[%s2] sm:$0xf]
    %v92 = vld [vmem:[%s2 + $0x4] sm:$0xf]
    %v93 = vld [vmem:[%s2 + $0x8] sm:$0xf]
    %v94 = vld [vmem:[%s2 + $0xc] sm:$0xf]
    %v95 = vld [vmem:[%s2 + $0x10] sm:$0xf]
    %v96 = vld [vmem:[%s2 + $0x14] sm:$0xf]
    %v97 = vld [vmem:[%s2 + $0x18] sm:$0xf]
    %v98 = vld [vmem:[%s2 + $0x1c] sm:$0xf]
    %v99 = vld [vmem:[%s2 + $0x20] sm:$0xf]
    %v100 = vld [vmem:[%s2 + $0x24] sm:$0xf]
    %v101 = vld [vmem:[%s2 + $0x28] sm:$0xf]
    %v102 = vld [vmem:[%s2 + $0x2c] sm:$0xf]
    %v103 = vld [vmem:[%s2 + $0x30] sm:$0xf]
    %v104 = vld [vmem:[%s2 + $0x34] sm:$0xf]
    %v105 = vld [vmem:[%s2 + $0x38] sm:$0xf]
    %v106 = vld [vmem:[%s2 + $0x3c] sm:$0xf]
    %v107 = vld [vmem:[%s3] sm:$0xff]
    %v124 = vunpack.c.l.b16 %v91
    %v125 = vunpack.c.l.b16 %v92
    %v126 = vunpack.c.l.b16 %v93
    %v127 = vunpack.c.l.b16 %v94
    %v128 = vunpack.c.l.b16 %v95
    %v129 = vunpack.c.l.b16 %v96
    %v130 = vunpack.c.l.b16 %v97
    %v131 = vunpack.c.l.b16 %v98
    %v132 = vunpack.c.l.b16 %v99
    %v133 = vunpack.c.l.b16 %v100
    %v134 = vunpack.c.l.b16 %v101
    %v135 = vunpack.c.l.b16 %v102
    %v136 = vunpack.c.l.b16 %v103
    %v137 = vunpack.c.l.b16 %v104
    %v138 = vunpack.c.l.b16 %v105
    %v139 = vunpack.c.l.b16 %v106
    %v140 = vpack.c.b16 %v125, %v124
    %v141 = vpack.c.b16 %v127, %v126
    %v142 = vpack.c.b16 %v129, %v128
    %v143 = vpack.c.b16 %v131, %v130
    %v144 = vpack.c.b16 %v133, %v132
    %v145 = vpack.c.b16 %v135, %v134
    %v146 = vpack.c.b16 %v137, %v136
    %v147 = vpack.c.b16 %v139, %v138
    %156 = vmatpush.bf16.msra.mxu0 %v147
    %157 = vmatpush.bf16.msra.mxu0 %v146
    %158 = vmatpush.bf16.msra.mxu0 %v145
    %159 = vmatpush.bf16.msra.mxu0 %v144
    %160 = vmatpush.bf16.msra.mxu0 %v143
    %161 = vmatpush.bf16.msra.mxu0 %v142
    %162 = vmatpush.bf16.msra.mxu0 %v141
    %163 = vmatpush.bf16.msra.mxu0 %v140
    %164 = vmatmul.bf16.gmra.mxu0 %v90
    %v165 = vpop.f32.mrf.mxu0
    %v166 = vadd.f32 %v107, %v165
    %v167 = vpop.f32.mrf.mxu0
    %v168 = vadd.f32 %v107, %v167
    %169 = vdwg.mxu0
    %v170 = vld [vmem:[%s4] sm:$0x1]
    %v172 = vperm.slane %v170, 0
    %v174 = vadd.f32 %v166, %v172
    %v175 = vadd.f32 %v168, %v172
    %v176 = vld [vmem:[%s5] sm:$0x1]
    %v177 = vld [vmem:[%s6] sm:$0x1]
    %vm178 = vcmask 261120
    %v179 = vsel %vm178, %v174, 0.0
    %180 = vadd.xlane.f32.xlu0 %v179
    %v181 = vpop.xlane.xlu0 %180
    %v182 = vsel %vm178, %v175, 0.0
    %183 = vadd.xlane.f32.xlu0 %v182
    %v184 = vpop.xlane.xlu0 %183
    %v185 = vrcp.pop 32.0
    %v186 = vmul.f32 32.0, %v185
    %v187 = vsub.f32 1.0, %v186
    %v188 = vmul.f32 %v185, %v187
    %v189 = vadd.f32 %v185, %v188
    %vm190 = vweird.f32 %v185
    %v191 = vsel %vm190, %v185, %v189
    %v192 = vmul.f32 %v181, %v191
    %v193 = vmul.f32 %v184, %v191
    %v194 = vsub.f32 %v174, %v192
    %v195 = vsub.f32 %v175, %v193
    %v196 = vmul.f32 %v194, %v194
    %v197 = vmul.f32 %v195, %v195
    %v198 = vsel %vm178, %v196, 0.0
    %199 = vadd.xlane.f32.xlu0 %v198
    %v200 = vpop.xlane.xlu0 %199
    %v201 = vsel %vm178, %v197, 0.0
    %202 = vadd.xlane.f32.xlu0 %v201
    %v203 = vpop.xlane.xlu0 %202
    %v204 = vmul.f32 %v200, %v191
    %v205 = vmul.f32 %v203, %v191
    %v206 = vadd.f32 %v204, 1e-12
    %v207 = vadd.f32 %v205, 1e-12
    %v208 = vrsqrt.pop %v206
    %v209 = vmul.f32 %v208, %v206
    %v210 = vmul.f32 %v209, %v208
    %v211 = vmul.f32 0.5, %v210
    %v212 = vsub.f32 1.5, %v211
    %v213 = vmul.f32 %v208, %v212
    %vm214 = vweird.f32 %v206
    %vm215 = vweird.f32 %v208
    %vm216 = vmor %vm214, %vm215
    %v217 = vsel %vm216, %v208, %v213
    %v218 = vrsqrt.pop %v207
    %v219 = vmul.f32 %v218, %v207
    %v220 = vmul.f32 %v219, %v218
    %v221 = vmul.f32 0.5, %v220
    %v222 = vsub.f32 1.5, %v221
    %v223 = vmul.f32 %v218, %v222
    %vm224 = vweird.f32 %v207
    %vm225 = vweird.f32 %v218
    %vm226 = vmor %vm224, %vm225
    %v227 = vsel %vm226, %v218, %v223
    %v228 = vmul.f32 %v194, %v217
    %v229 = vmul.f32 %v195, %v227
    %v231 = vperm.slane %v176, 0
    %v233 = vmul.f32 %v228, %v231
    %v234 = vmul.f32 %v229, %v231
    %v236 = vperm.slane %v177, 0
    %v238 = vadd.f32 %v233, %v236
    %v239 = vadd.f32 %v234, %v236
    %v240 = vld [vmem:[%s1] sm:$0x3]
    %v241 = vsub.f32 1.0, %v240
    %v242 = vmul.f32 %v241, -10000.0
    %v243 = vperm.slane %v242, 0
    %v244 = vperm.slane %v242, 1
    %v245 = vpack.c.bf16 %v239, %v238
    %v246 = vld [vmem:[%s7] sm:$0xf]
    %v247 = vld [vmem:[%s7 + $0x4] sm:$0xf]
    %v248 = vld [vmem:[%s7 + $0x8] sm:$0xf]
    %v249 = vld [vmem:[%s7 + $0xc] sm:$0xf]
    %v250 = vld [vmem:[%s8] sm:$0x1]
    %v252 = vperm.slane %v250, 0
    %v258 = vunpack.c.l.b16 %v246
    %v259 = vunpack.c.l.b16 %v247
    %v260 = vunpack.c.l.b16 %v248
    %v261 = vunpack.c.l.b16 %v249
    %v262 = vpack.c.b16 %v259, %v258
    %v263 = vpack.c.b16 %v261, %v260
    %v267 = vsel %vm178, %v245, 0
    %269 = vmatpush.bf16.msra.mxu0 0
    %270 = vmatpush.bf16.msra.mxu0 0
    %271 = vmatpush.bf16.msra.mxu0 0
    %272 = vmatpush.bf16.msra.mxu0 0
    %273 = vmatpush.bf16.msra.mxu0 0
    %274 = vmatpush.bf16.msra.mxu0 0
    %275 = vmatpush.bf16.msra.mxu0 %v263
    %276 = vmatpush.bf16.msra.mxu0 %v262
    %277 = vmatmul.bf16.gmra.mxu0 %v267
    %v278 = vpop.f32.mrf.mxu0
    %v279 = vadd.f32 %v252, %v278
    %v280 = vpop.f32.mrf.mxu0
    %v281 = vadd.f32 %v252, %v280
    %282 = vdwg.mxu0
    %284 = vrot.lane.b32.xlu0 %v279, 96
    %v285 = vpop.permute.xlu0 %284
    %vm286 = vcmask 130048
    %v287 = vsel %vm286, %v279, 0
    %v289 = vsel %vm286, %v285, 0
    %291 = vmatpush.xpose.msra.mxu0 0.0
    %292 = vmatpush.xpose.msra.mxu0 0.0
    %293 = vmatpush.xpose.msra.mxu0 0.0
    %294 = vmatpush.xpose.msra.mxu0 0.0
    %295 = vmatpush.xpose.msra.mxu0 0.0
    %296 = vmatpush.xpose.msra.mxu0 0.0
    %297 = vmatpush.xpose.msra.mxu0 0.0
    %298 = vmatpush.xpose.msra.mxu0 0.0
    %299 = vmatpush.xpose.msra.mxu0 0.0
    %300 = vmatpush.xpose.msra.mxu0 0.0
    %301 = vmatpush.xpose.msra.mxu0 0.0
    %302 = vmatpush.xpose.msra.mxu0 0.0
    %303 = vmatpush.xpose.msra.mxu0 0.0
    %304 = vmatpush.xpose.msra.mxu0 0.0
    %305 = vmatpush.xpose.msra.mxu0 0.0
    %306 = vmatpush.xpose.msra.mxu0 %v289
    %307 = vmatmul.f32.gmra.mxu0 %v287
    %v308 = vpop.f32.mrf.mxu0
    %v309 = vadd.f32 %v243, %v308
    %310 = vdwg.mxu0
    %vm311 = vcmask 64512
    %v312 = vsel %vm311, %v309, -inf
    %313 = vmax.xlane.f32.xlu0 %v312
    %v314 = vpop.xlane.xlu0 %313
    %v315 = vsub.f32 %v309, %v314
    %v316 = vmul.f32 %v315, 1.442695
    %v317 = vpow.pop %v316
    %v318 = vsel %vm311, %v317, 0.0
    %319 = vadd.xlane.f32.xlu0 %v318
    %v320 = vpop.xlane.xlu0 %319
    %v321 = vrcp.pop %v320
    %v322 = vmul.f32 %v317, %v321
    %323 = vrot.lane.b32.xlu0 %v279, 64
    %v324 = vpop.permute.xlu0 %323
    %v327 = vsel %vm311, %v322, 0
    %329 = vmatpush.msra.mxu0 0.0
    %330 = vmatpush.msra.mxu0 0.0
    %331 = vmatpush.msra.mxu0 0.0
    %332 = vmatpush.msra.mxu0 0.0
    %333 = vmatpush.msra.mxu0 0.0
    %334 = vmatpush.msra.mxu0 0.0
    %335 = vmatpush.msra.mxu0 0.0
    %336 = vmatpush.msra.mxu0 0.0
    %337 = vmatpush.msra.mxu0 0.0
    %338 = vmatpush.msra.mxu0 0.0
    %339 = vmatpush.msra.mxu0 0.0
    %340 = vmatpush.msra.mxu0 0.0
    %341 = vmatpush.msra.mxu0 0.0
    %342 = vmatpush.msra.mxu0 0.0
    %343 = vmatpush.msra.mxu0 0.0
    %344 = vmatpush.msra.mxu0 %v324
    %345 = vmatmul.f32.gmra.mxu0 %v327
    %v346 = vpop.f32.mrf.mxu0
    %v347 = vadd.f32 0.0, %v346
    %348 = vdwg.mxu0
    %349 = vrot.lane.b32.xlu0 %v279, 112
    %v350 = vpop.permute.xlu0 %349
    %351 = vrot.lane.b32.xlu0 %v279, 80
    %v352 = vpop.permute.xlu0 %351
    %v353 = vsel %vm286, %v350, 0
    %v355 = vsel %vm286, %v352, 0
    %357 = vmatpush.xpose.msra.mxu0 0.0
    %358 = vmatpush.xpose.msra.mxu0 0.0
    %359 = vmatpush.xpose.msra.mxu0 0.0
    %360 = vmatpush.xpose.msra.mxu0 0.0
    %361 = vmatpush.xpose.msra.mxu0 0.0
    %362 = vmatpush.xpose.msra.mxu0 0.0
    %363 = vmatpush.xpose.msra.mxu0 0.0
    %364 = vmatpush.xpose.msra.mxu0 0.0
    %365 = vmatpush.xpose.msra.mxu0 0.0
    %366 = vmatpush.xpose.msra.mxu0 0.0
    %367 = vmatpush.xpose.msra.mxu0 0.0
    %368 = vmatpush.xpose.msra.mxu0 0.0
    %369 = vmatpush.xpose.msra.mxu0 0.0
    %370 = vmatpush.xpose.msra.mxu0 0.0
    %371 = vmatpush.xpose.msra.mxu0 0.0
    %372 = vmatpush.xpose.msra.mxu0 %v355
    %373 = vmatmul.f32.gmra.mxu0 %v353
    %v374 = vpop.f32.mrf.mxu0
    %v375 = vadd.f32 %v243, %v374
    %376 = vdwg.mxu0
    %v377 = vsel %vm311, %v375, -inf
    %378 = vmax.xlane.f32.xlu0 %v377
    %v379 = vpop.xlane.xlu0 %378
    %v380 = vsub.f32 %v375, %v379
    %v381 = vmul.f32 %v380, 1.442695
    %v382 = vpow.pop %v381
    %v383 = vsel %vm311, %v382, 0.0
    %384 = vadd.xlane.f32.xlu0 %v383
    %v385 = vpop.xlane.xlu0 %384
    %v386 = vrcp.pop %v385
    %v387 = vmul.f32 %v382, %v386
    %388 = vrot.lane.b32.xlu0 %v279, 48
    %v389 = vpop.permute.xlu0 %388
    %v392 = vsel %vm311, %v387, 0
    %394 = vmatpush.msra.mxu0 0.0
    %395 = vmatpush.msra.mxu0 0.0
    %396 = vmatpush.msra.mxu0 0.0
    %397 = vmatpush.msra.mxu0 0.0
    %398 = vmatpush.msra.mxu0 0.0
    %399 = vmatpush.msra.mxu0 0.0
    %400 = vmatpush.msra.mxu0 0.0
    %401 = vmatpush.msra.mxu0 0.0
    %402 = vmatpush.msra.mxu0 0.0
    %403 = vmatpush.msra.mxu0 0.0
    %404 = vmatpush.msra.mxu0 0.0
    %405 = vmatpush.msra.mxu0 0.0
    %406 = vmatpush.msra.mxu0 0.0
    %407 = vmatpush.msra.mxu0 0.0
    %408 = vmatpush.msra.mxu0 0.0
    %409 = vmatpush.msra.mxu0 %v389
    %410 = vmatmul.f32.gmra.mxu0 %v392
    %v411 = vpop.f32.mrf.mxu0
    %v412 = vadd.f32 0.0, %v411
    %413 = vdwg.mxu0
    %415 = vrot.lane.b32.xlu0 %v412, 16
    %v416 = vpop.permute.xlu0 %415
    %v418 = vsel %vm286, %v347, %v416
    %420 = vrot.lane.b32.xlu0 %v281, 96
    %v421 = vpop.permute.xlu0 %420
    %v422 = vsel %vm286, %v281, 0
    %v424 = vsel %vm286, %v421, 0
    %426 = vmatpush.xpose.msra.mxu0 0.0
    %427 = vmatpush.xpose.msra.mxu0 0.0
    %428 = vmatpush.xpose.msra.mxu0 0.0
    %429 = vmatpush.xpose.msra.mxu0 0.0
    %430 = vmatpush.xpose.msra.mxu0 0.0
    %431 = vmatpush.xpose.msra.mxu0 0.0
    %432 = vmatpush.xpose.msra.mxu0 0.0
    %433 = vmatpush.xpose.msra.mxu0 0.0
    %434 = vmatpush.xpose.msra.mxu0 0.0
    %435 = vmatpush.xpose.msra.mxu0 0.0
    %436 = vmatpush.xpose.msra.mxu0 0.0
    %437 = vmatpush.xpose.msra.mxu0 0.0
    %438 = vmatpush.xpose.msra.mxu0 0.0
    %439 = vmatpush.xpose.msra.mxu0 0.0
    %440 = vmatpush.xpose.msra.mxu0 0.0
    %441 = vmatpush.xpose.msra.mxu0 %v424
    %442 = vmatmul.f32.gmra.mxu0 %v422
    %v443 = vpop.f32.mrf.mxu0
    %v444 = vadd.f32 %v244, %v443
    %445 = vdwg.mxu0
    %v446 = vsel %vm311, %v444, -inf
    %447 = vmax.xlane.f32.xlu0 %v446
    %v448 = vpop.xlane.xlu0 %447
    %v449 = vsub.f32 %v444, %v448
    %v450 = vmul.f32 %v449, 1.442695
    %v451 = vpow.pop %v450
    %v452 = vsel %vm311, %v451, 0.0
    %453 = vadd.xlane.f32.xlu0 %v452
    %v454 = vpop.xlane.xlu0 %453
    %v455 = vrcp.pop %v454
    %v456 = vmul.f32 %v451, %v455
    %457 = vrot.lane.b32.xlu0 %v281, 64
    %v458 = vpop.permute.xlu0 %457
    %v461 = vsel %vm311, %v456, 0
    %463 = vmatpush.msra.mxu0 0.0
    %464 = vmatpush.msra.mxu0 0.0
    %465 = vmatpush.msra.mxu0 0.0
    %466 = vmatpush.msra.mxu0 0.0
    %467 = vmatpush.msra.mxu0 0.0
    %468 = vmatpush.msra.mxu0 0.0
    %469 = vmatpush.msra.mxu0 0.0
    %470 = vmatpush.msra.mxu0 0.0
    %471 = vmatpush.msra.mxu0 0.0
    %472 = vmatpush.msra.mxu0 0.0
    %473 = vmatpush.msra.mxu0 0.0
    %474 = vmatpush.msra.mxu0 0.0
    %475 = vmatpush.msra.mxu0 0.0
    %476 = vmatpush.msra.mxu0 0.0
    %477 = vmatpush.msra.mxu0 0.0
    %478 = vmatpush.msra.mxu0 %v458
    %479 = vmatmul.f32.gmra.mxu0 %v461
    %v480 = vpop.f32.mrf.mxu0
    %v481 = vadd.f32 0.0, %v480
    %482 = vdwg.mxu0
    %483 = vrot.lane.b32.xlu0 %v281, 112
    %v484 = vpop.permute.xlu0 %483
    %485 = vrot.lane.b32.xlu0 %v281, 80
    %v486 = vpop.permute.xlu0 %485
    %v487 = vsel %vm286, %v484, 0
    %v489 = vsel %vm286, %v486, 0
    %491 = vmatpush.xpose.msra.mxu0 0.0
    %492 = vmatpush.xpose.msra.mxu0 0.0
    %493 = vmatpush.xpose.msra.mxu0 0.0
    %494 = vmatpush.xpose.msra.mxu0 0.0
    %495 = vmatpush.xpose.msra.mxu0 0.0
    %496 = vmatpush.xpose.msra.mxu0 0.0
    %497 = vmatpush.xpose.msra.mxu0 0.0
    %498 = vmatpush.xpose.msra.mxu0 0.0
    %499 = vmatpush.xpose.msra.mxu0 0.0
    %500 = vmatpush.xpose.msra.mxu0 0.0
    %501 = vmatpush.xpose.msra.mxu0 0.0
    %502 = vmatpush.xpose.msra.mxu0 0.0
    %503 = vmatpush.xpose.msra.mxu0 0.0
    %504 = vmatpush.xpose.msra.mxu0 0.0
    %505 = vmatpush.xpose.msra.mxu0 0.0
    %506 = vmatpush.xpose.msra.mxu0 %v489
    %507 = vmatmul.f32.gmra.mxu0 %v487
    %v508 = vpop.f32.mrf.mxu0
    %v509 = vadd.f32 %v244, %v508
    %510 = vdwg.mxu0
    %v511 = vsel %vm311, %v509, -inf
    %512 = vmax.xlane.f32.xlu0 %v511
    %v513 = vpop.xlane.xlu0 %512
    %v514 = vsub.f32 %v509, %v513
    %v515 = vmul.f32 %v514, 1.442695
    %v516 = vpow.pop %v515
    %v517 = vsel %vm311, %v516, 0.0
    %518 = vadd.xlane.f32.xlu0 %v517
    %v519 = vpop.xlane.xlu0 %518
    %v520 = vrcp.pop %v519
    %v521 = vmul.f32 %v516, %v520
    %522 = vrot.lane.b32.xlu0 %v281, 48
    %v523 = vpop.permute.xlu0 %522
    %v526 = vsel %vm311, %v521, 0
    %528 = vmatpush.msra.mxu0 0.0
    %529 = vmatpush.msra.mxu0 0.0
    %530 = vmatpush.msra.mxu0 0.0
    %531 = vmatpush.msra.mxu0 0.0
    %532 = vmatpush.msra.mxu0 0.0
    %533 = vmatpush.msra.mxu0 0.0
    %534 = vmatpush.msra.mxu0 0.0
    %535 = vmatpush.msra.mxu0 0.0
    %536 = vmatpush.msra.mxu0 0.0
    %537 = vmatpush.msra.mxu0 0.0
    %538 = vmatpush.msra.mxu0 0.0
    %539 = vmatpush.msra.mxu0 0.0
    %540 = vmatpush.msra.mxu0 0.0
    %541 = vmatpush.msra.mxu0 0.0
    %542 = vmatpush.msra.mxu0 0.0
    %543 = vmatpush.msra.mxu0 %v523
    %544 = vmatmul.f32.gmra.mxu0 %v526
    %v545 = vpop.f32.mrf.mxu0
    %v546 = vadd.f32 0.0, %v545
    %547 = vdwg.mxu0
    %549 = vrot.lane.b32.xlu0 %v546, 16
    %v550 = vpop.permute.xlu0 %549
    %v552 = vsel %vm286, %v481, %v550
    %v553 = vpack.c.bf16 %v552, %v418
    %v554 = vld [vmem:[%s9] sm:$0xf]
    %v555 = vld [vmem:[%s9 + $0x4] sm:$0xf]
    %v556 = vld [vmem:[%s9 + $0x8] sm:$0xf]
    %v557 = vld [vmem:[%s9 + $0xc] sm:$0xf]
    %v558 = vld [vmem:[%s10] sm:$0x1]
    %v560 = vperm.slane %v558, 0
    %v566 = vunpack.c.l.b16 %v554
    %v567 = vunpack.c.l.b16 %v555
    %v568 = vunpack.c.l.b16 %v556
    %v569 = vunpack.c.l.b16 %v557
    %v570 = vpack.c.b16 %v567, %v566
    %v571 = vpack.c.b16 %v569, %v568
    %v575 = vsel %vm178, %v553, 0
    %577 = vmatpush.bf16.msra.mxu0 0
    %578 = vmatpush.bf16.msra.mxu0 0
    %579 = vmatpush.bf16.msra.mxu0 0
    %580 = vmatpush.bf16.msra.mxu0 0
    %581 = vmatpush.bf16.msra.mxu0 0
    %582 = vmatpush.bf16.msra.mxu0 0
    %583 = vmatpush.bf16.msra.mxu0 %v571
    %584 = vmatpush.bf16.msra.mxu0 %v570
    %585 = vmatmul.bf16.gmra.mxu0 %v575
    %v586 = vpop.f32.mrf.mxu0
    %v587 = vadd.f32 %v560, %v586
    %v588 = vpop.f32.mrf.mxu0
    %v589 = vadd.f32 %v560, %v588
    %590 = vdwg.mxu0
    %v591 = vadd.f32 %v238, %v587
    %v592 = vadd.f32 %v239, %v589
    %v593 = vld [vmem:[%s11] sm:$0x1]
    %v594 = vld [vmem:[%s12] sm:$0x1]
    %v595 = vsel %vm178, %v591, 0.0
    %596 = vadd.xlane.f32.xlu0 %v595
    %v597 = vpop.xlane.xlu0 %596
    %v598 = vsel %vm178, %v592, 0.0
    %599 = vadd.xlane.f32.xlu0 %v598
    %v600 = vpop.xlane.xlu0 %599
    %v601 = vmul.f32 %v597, %v191
    %v602 = vmul.f32 %v600, %v191
    %v603 = vsub.f32 %v591, %v601
    %v604 = vsub.f32 %v592, %v602
    %v605 = vmul.f32 %v603, %v603
    %v606 = vmul.f32 %v604, %v604
    %v607 = vsel %vm178, %v605, 0.0
    %608 = vadd.xlane.f32.xlu0 %v607
    %v609 = vpop.xlane.xlu0 %608
    %v610 = vsel %vm178, %v606, 0.0
    %611 = vadd.xlane.f32.xlu0 %v610
    %v612 = vpop.xlane.xlu0 %611
    %v613 = vmul.f32 %v609, %v191
    %v614 = vmul.f32 %v612, %v191
    %v615 = vadd.f32 %v613, 1e-12
    %v616 = vadd.f32 %v614, 1e-12
    %v617 = vrsqrt.pop %v615
    %v618 = vmul.f32 %v617, %v615
    %v619 = vmul.f32 %v618, %v617
    %v620 = vmul.f32 0.5, %v619
    %v621 = vsub.f32 1.5, %v620
    %v622 = vmul.f32 %v617, %v621
    %vm623 = vweird.f32 %v615
    %vm624 = vweird.f32 %v617
    %vm625 = vmor %vm623, %vm624
    %v626 = vsel %vm625, %v617, %v622
    %v627 = vrsqrt.pop %v616
    %v628 = vmul.f32 %v627, %v616
    %v629 = vmul.f32 %v628, %v627
    %v630 = vmul.f32 0.5, %v629
    %v631 = vsub.f32 1.5, %v630
    %v632 = vmul.f32 %v627, %v631
    %vm633 = vweird.f32 %v616
    %vm634 = vweird.f32 %v627
    %vm635 = vmor %vm633, %vm634
    %v636 = vsel %vm635, %v627, %v632
    %v637 = vmul.f32 %v603, %v626
    %v638 = vmul.f32 %v604, %v636
    %v640 = vperm.slane %v593, 0
    %v642 = vmul.f32 %v637, %v640
    %v643 = vmul.f32 %v638, %v640
    %v645 = vperm.slane %v594, 0
    %v647 = vadd.f32 %v642, %v645
    %v648 = vadd.f32 %v643, %v645
    %v649 = vpack.c.bf16 %v648, %v647
    %v650 = vld [vmem:[%s13] sm:$0xf]
    %v651 = vld [vmem:[%s13 + $0x4] sm:$0xf]
    %v652 = vld [vmem:[%s13 + $0x8] sm:$0xf]
    %v653 = vld [vmem:[%s13 + $0xc] sm:$0xf]
    %v654 = vld [vmem:[%s14] sm:$0x1]
    %v656 = vperm.slane %v654, 0
    %v662 = vunpack.c.l.b16 %v650
    %v663 = vunpack.c.l.b16 %v651
    %v664 = vunpack.c.l.b16 %v652
    %v665 = vunpack.c.l.b16 %v653
    %v666 = vpack.c.b16 %v663, %v662
    %v667 = vpack.c.b16 %v665, %v664
    %v671 = vsel %vm178, %v649, 0
    %673 = vmatpush.bf16.msra.mxu0 0
    %674 = vmatpush.bf16.msra.mxu0 0
    %675 = vmatpush.bf16.msra.mxu0 0
    %676 = vmatpush.bf16.msra.mxu0 0
    %677 = vmatpush.bf16.msra.mxu0 0
    %678 = vmatpush.bf16.msra.mxu0 0
    %679 = vmatpush.bf16.msra.mxu0 %v667
    %680 = vmatpush.bf16.msra.mxu0 %v666
    %681 = vmatmul.bf16.gmra.mxu0 %v671
    %v682 = vpop.f32.mrf.mxu0
    %v683 = vadd.f32 %v656, %v682
    %v684 = vpop.f32.mrf.mxu0
    %v685 = vadd.f32 %v656, %v684
    %686 = vdwg.mxu0
    %v687 = vmul.f32 %v683, 0.5
    %v688 = vmul.f32 %v685, 0.5
    %v689 = vmul.f32 %v683, 0.044715
    %v690 = vmul.f32 %v685, 0.044715
    %v691 = vmul.f32 %v689, %v683
    %v692 = vmul.f32 %v690, %v685
    %v693 = vmul.f32 %v691, %v683
    %v694 = vmul.f32 %v692, %v685
    %v695 = vadd.f32 %v683, %v693
    %v696 = vadd.f32 %v685, %v694
    %v697 = vmul.f32 %v695, 0.7978846
    %v698 = vmul.f32 %v696, 0.7978846
    %v699 = vtanh.pop %v697
    %v700 = vtanh.pop %v698
    %v701 = vadd.f32 %v699, 1.0
    %v702 = vadd.f32 %v700, 1.0
    %v703 = vmul.f32 %v687, %v701
    %v704 = vmul.f32 %v688, %v702
    %v705 = vpack.c.bf16 %v704, %v703
    %v706 = vld [vmem:[%s15] sm:$0xf]
    %v707 = vld [vmem:[%s15 + $0x4] sm:$0xf]
    %v708 = vld [vmem:[%s15 + $0x8] sm:$0xf]
    %v709 = vld [vmem:[%s15 + $0xc] sm:$0xf]
    %v710 = vld [vmem:[%s15 + $0x10] sm:$0xf]
    %v711 = vld [vmem:[%s15 + $0x14] sm:$0xf]
    %v712 = vld [vmem:[%s15 + $0x18] sm:$0xf]
    %v713 = vld [vmem:[%s15 + $0x1c] sm:$0xf]
    %v714 = vld [vmem:[%s16] sm:$0x1]
    %v716 = vperm.slane %v714, 0
    %v726 = vunpack.c.l.b16 %v706
    %v727 = vunpack.c.l.b16 %v707
    %v728 = vunpack.c.l.b16 %v708
    %v729 = vunpack.c.l.b16 %v709
    %v730 = vunpack.c.l.b16 %v710
    %v731 = vunpack.c.l.b16 %v711
    %v732 = vunpack.c.l.b16 %v712
    %v733 = vunpack.c.l.b16 %v713
    %v734 = vpack.c.b16 %v727, %v726
    %v735 = vpack.c.b16 %v729, %v728
    %v736 = vpack.c.b16 %v731, %v730
    %v737 = vpack.c.b16 %v733, %v732
    %vm742 = vcmask 523264
    %v744 = vsel %vm742, %v705, 0
    %746 = vmatpush.bf16.msra.mxu0 0
    %747 = vmatpush.bf16.msra.mxu0 0
    %748 = vmatpush.bf16.msra.mxu0 0
    %749 = vmatpush.bf16.msra.mxu0 0
    %750 = vmatpush.bf16.msra.mxu0 %v737
    %751 = vmatpush.bf16.msra.mxu0 %v736
    %752 = vmatpush.bf16.msra.mxu0 %v735
    %753 = vmatpush.bf16.msra.mxu0 %v734
    %754 = vmatmul.bf16.gmra.mxu0 %v744
    %v755 = vpop.f32.mrf.mxu0
    %v756 = vadd.f32 %v716, %v755
    %v757 = vpop.f32.mrf.mxu0
    %v758 = vadd.f32 %v716, %v757
    %759 = vdwg.mxu0
    %v760 = vadd.f32 %v647, %v756
    %v761 = vadd.f32 %v648, %v758
    %v762 = vld [vmem:[%s17] sm:$0x1]
    %v763 = vld [vmem:[%s18] sm:$0x1]
    %v764 = vsel %vm178, %v760, 0.0
    %765 = vadd.xlane.f32.xlu0 %v764
    %v766 = vpop.xlane.xlu0 %765
    %v767 = vsel %vm178, %v761, 0.0
    %768 = vadd.xlane.f32.xlu0 %v767
    %v769 = vpop.xlane.xlu0 %768
    %v770 = vmul.f32 %v766, %v191
    %v771 = vmul.f32 %v769, %v191
    %v772 = vsub.f32 %v760, %v770
    %v773 = vsub.f32 %v761, %v771
    %v774 = vmul.f32 %v772, %v772
    %v775 = vmul.f32 %v773, %v773
    %v776 = vsel %vm178, %v774, 0.0
    %777 = vadd.xlane.f32.xlu0 %v776
    %v778 = vpop.xlane.xlu0 %777
    %v779 = vsel %vm178, %v775, 0.0
    %780 = vadd.xlane.f32.xlu0 %v779
    %v781 = vpop.xlane.xlu0 %780
    %v782 = vmul.f32 %v778, %v191
    %v783 = vmul.f32 %v781, %v191
    %v784 = vadd.f32 %v782, 1e-12
    %v785 = vadd.f32 %v783, 1e-12
    %v786 = vrsqrt.pop %v784
    %v787 = vmul.f32 %v786, %v784
    %v788 = vmul.f32 %v787, %v786
    %v789 = vmul.f32 0.5, %v788
    %v790 = vsub.f32 1.5, %v789
    %v791 = vmul.f32 %v786, %v790
    %vm792 = vweird.f32 %v784
    %vm793 = vweird.f32 %v786
    %vm794 = vmor %vm792, %vm793
    %v795 = vsel %vm794, %v786, %v791
    %v796 = vrsqrt.pop %v785
    %v797 = vmul.f32 %v796, %v785
    %v798 = vmul.f32 %v797, %v796
    %v799 = vmul.f32 0.5, %v798
    %v800 = vsub.f32 1.5, %v799
    %v801 = vmul.f32 %v796, %v800
    %vm802 = vweird.f32 %v785
    %vm803 = vweird.f32 %v796
    %vm804 = vmor %vm802, %vm803
    %v805 = vsel %vm804, %v796, %v801
    %v806 = vmul.f32 %v772, %v795
    %v807 = vmul.f32 %v773, %v805
    %v809 = vperm.slane %v762, 0
    %v811 = vmul.f32 %v806, %v809
    %v812 = vmul.f32 %v807, %v809
    %v814 = vperm.slane %v763, 0
    %v816 = vadd.f32 %v811, %v814
    %v817 = vadd.f32 %v812, %v814
    %v818 = vpack.c.bf16 %v817, %v816
    %s819 = scalar_lea.vmem %s7, 16
    %v820 = vld [vmem:[%s819] sm:$0xf]
    %v821 = vld [vmem:[%s819 + $0x4] sm:$0xf]
    %v822 = vld [vmem:[%s819 + $0x8] sm:$0xf]
    %v823 = vld [vmem:[%s819 + $0xc] sm:$0xf]
    %s824 = scalar_lea.vmem %s8, 1
    %v825 = vld [vmem:[%s824] sm:$0x1]
    %v827 = vperm.slane %v825, 0
    %v833 = vunpack.c.l.b16 %v820
    %v834 = vunpack.c.l.b16 %v821
    %v835 = vunpack.c.l.b16 %v822
    %v836 = vunpack.c.l.b16 %v823
    %v837 = vpack.c.b16 %v834, %v833
    %v838 = vpack.c.b16 %v836, %v835
    %v842 = vsel %vm178, %v818, 0
    %844 = vmatpush.bf16.msra.mxu0 0
    %845 = vmatpush.bf16.msra.mxu0 0
    %846 = vmatpush.bf16.msra.mxu0 0
    %847 = vmatpush.bf16.msra.mxu0 0
    %848 = vmatpush.bf16.msra.mxu0 0
    %849 = vmatpush.bf16.msra.mxu0 0
    %850 = vmatpush.bf16.msra.mxu0 %v838
    %851 = vmatpush.bf16.msra.mxu0 %v837
    %852 = vmatmul.bf16.gmra.mxu0 %v842
    %v853 = vpop.f32.mrf.mxu0
    %v854 = vadd.f32 %v827, %v853
    %v855 = vpop.f32.mrf.mxu0
    %v856 = vadd.f32 %v827, %v855
    %857 = vdwg.mxu0
    %859 = vrot.lane.b32.xlu0 %v854, 96
    %v860 = vpop.permute.xlu0 %859
    %v861 = vsel %vm286, %v854, 0
    %v863 = vsel %vm286, %v860, 0
    %865 = vmatpush.xpose.msra.mxu0 0.0
    %866 = vmatpush.xpose.msra.mxu0 0.0
    %867 = vmatpush.xpose.msra.mxu0 0.0
    %868 = vmatpush.xpose.msra.mxu0 0.0
    %869 = vmatpush.xpose.msra.mxu0 0.0
    %870 = vmatpush.xpose.msra.mxu0 0.0
    %871 = vmatpush.xpose.msra.mxu0 0.0
    %872 = vmatpush.xpose.msra.mxu0 0.0
    %873 = vmatpush.xpose.msra.mxu0 0.0
    %874 = vmatpush.xpose.msra.mxu0 0.0
    %875 = vmatpush.xpose.msra.mxu0 0.0
    %876 = vmatpush.xpose.msra.mxu0 0.0
    %877 = vmatpush.xpose.msra.mxu0 0.0
    %878 = vmatpush.xpose.msra.mxu0 0.0
    %879 = vmatpush.xpose.msra.mxu0 0.0
    %880 = vmatpush.xpose.msra.mxu0 %v863
    %881 = vmatmul.f32.gmra.mxu0 %v861
    %v882 = vpop.f32.mrf.mxu0
    %v883 = vadd.f32 %v243, %v882
    %884 = vdwg.mxu0
    %v885 = vsel %vm311, %v883, -inf
    %886 = vmax.xlane.f32.xlu0 %v885
    %v887 = vpop.xlane.xlu0 %886
    %v888 = vsub.f32 %v883, %v887
    %v889 = vmul.f32 %v888, 1.442695
    %v890 = vpow.pop %v889
    %v891 = vsel %vm311, %v890, 0.0
    %892 = vadd.xlane.f32.xlu0 %v891
    %v893 = vpop.xlane.xlu0 %892
    %v894 = vrcp.pop %v893
    %v895 = vmul.f32 %v890, %v894
    %896 = vrot.lane.b32.xlu0 %v854, 64
    %v897 = vpop.permute.xlu0 %896
    %v900 = vsel %vm311, %v895, 0
    %902 = vmatpush.msra.mxu0 0.0
    %903 = vmatpush.msra.mxu0 0.0
    %904 = vmatpush.msra.mxu0 0.0
    %905 = vmatpush.msra.mxu0 0.0
    %906 = vmatpush.msra.mxu0 0.0
    %907 = vmatpush.msra.mxu0 0.0
    %908 = vmatpush.msra.mxu0 0.0
    %909 = vmatpush.msra.mxu0 0.0
    %910 = vmatpush.msra.mxu0 0.0
    %911 = vmatpush.msra.mxu0 0.0
    %912 = vmatpush.msra.mxu0 0.0
    %913 = vmatpush.msra.mxu0 0.0
    %914 = vmatpush.msra.mxu0 0.0
    %915 = vmatpush.msra.mxu0 0.0
    %916 = vmatpush.msra.mxu0 0.0
    %917 = vmatpush.msra.mxu0 %v897
    %918 = vmatmul.f32.gmra.mxu0 %v900
    %v919 = vpop.f32.mrf.mxu0
    %v920 = vadd.f32 0.0, %v919
    %921 = vdwg.mxu0
    %922 = vrot.lane.b32.xlu0 %v854, 112
    %v923 = vpop.permute.xlu0 %922
    %924 = vrot.lane.b32.xlu0 %v854, 80
    %v925 = vpop.permute.xlu0 %924
    %v926 = vsel %vm286, %v923, 0
    %v928 = vsel %vm286, %v925, 0
    %930 = vmatpush.xpose.msra.mxu0 0.0
    %931 = vmatpush.xpose.msra.mxu0 0.0
    %932 = vmatpush.xpose.msra.mxu0 0.0
    %933 = vmatpush.xpose.msra.mxu0 0.0
    %934 = vmatpush.xpose.msra.mxu0 0.0
    %935 = vmatpush.xpose.msra.mxu0 0.0
    %936 = vmatpush.xpose.msra.mxu0 0.0
    %937 = vmatpush.xpose.msra.mxu0 0.0
    %938 = vmatpush.xpose.msra.mxu0 0.0
    %939 = vmatpush.xpose.msra.mxu0 0.0
    %940 = vmatpush.xpose.msra.mxu0 0.0
    %941 = vmatpush.xpose.msra.mxu0 0.0
    %942 = vmatpush.xpose.msra.mxu0 0.0
    %943 = vmatpush.xpose.msra.mxu0 0.0
    %944 = vmatpush.xpose.msra.mxu0 0.0
    %945 = vmatpush.xpose.msra.mxu0 %v928
    %946 = vmatmul.f32.gmra.mxu0 %v926
    %v947 = vpop.f32.mrf.mxu0
    %v948 = vadd.f32 %v243, %v947
    %949 = vdwg.mxu0
    %v950 = vsel %vm311, %v948, -inf
    %951 = vmax.xlane.f32.xlu0 %v950
    %v952 = vpop.xlane.xlu0 %951
    %v953 = vsub.f32 %v948, %v952
    %v954 = vmul.f32 %v953, 1.442695
    %v955 = vpow.pop %v954
    %v956 = vsel %vm311, %v955, 0.0
    %957 = vadd.xlane.f32.xlu0 %v956
    %v958 = vpop.xlane.xlu0 %957
    %v959 = vrcp.pop %v958
    %v960 = vmul.f32 %v955, %v959
    %961 = vrot.lane.b32.xlu0 %v854, 48
    %v962 = vpop.permute.xlu0 %961
    %v965 = vsel %vm311, %v960, 0
    %967 = vmatpush.msra.mxu0 0.0
    %968 = vmatpush.msra.mxu0 0.0
    %969 = vmatpush.msra.mxu0 0.0
    %970 = vmatpush.msra.mxu0 0.0
    %971 = vmatpush.msra.mxu0 0.0
    %972 = vmatpush.msra.mxu0 0.0
    %973 = vmatpush.msra.mxu0 0.0
    %974 = vmatpush.msra.mxu0 0.0
    %975 = vmatpush.msra.mxu0 0.0
    %976 = vmatpush.msra.mxu0 0.0
    %977 = vmatpush.msra.mxu0 0.0
    %978 = vmatpush.msra.mxu0 0.0
    %979 = vmatpush.msra.mxu0 0.0
    %980 = vmatpush.msra.mxu0 0.0
    %981 = vmatpush.msra.mxu0 0.0
    %982 = vmatpush.msra.mxu0 %v962
    %983 = vmatmul.f32.gmra.mxu0 %v965
    %v984 = vpop.f32.mrf.mxu0
    %v985 = vadd.f32 0.0, %v984
    %986 = vdwg.mxu0
    %988 = vrot.lane.b32.xlu0 %v985, 16
    %v989 = vpop.permute.xlu0 %988
    %v991 = vsel %vm286, %v920, %v989
    %993 = vrot.lane.b32.xlu0 %v856, 96
    %v994 = vpop.permute.xlu0 %993
    %v995 = vsel %vm286, %v856, 0
    %v997 = vsel %vm286, %v994, 0
    %999 = vmatpush.xpose.msra.mxu0 0.0
    %1000 = vmatpush.xpose.msra.mxu0 0.0
    %1001 = vmatpush.xpose.msra.mxu0 0.0
    %1002 = vmatpush.xpose.msra.mxu0 0.0
    %1003 = vmatpush.xpose.msra.mxu0 0.0
    %1004 = vmatpush.xpose.msra.mxu0 0.0
    %1005 = vmatpush.xpose.msra.mxu0 0.0
    %1006 = vmatpush.xpose.msra.mxu0 0.0
    %1007 = vmatpush.xpose.msra.mxu0 0.0
    %1008 = vmatpush.xpose.msra.mxu0 0.0
    %1009 = vmatpush.xpose.msra.mxu0 0.0
    %1010 = vmatpush.xpose.msra.mxu0 0.0
    %1011 = vmatpush.xpose.msra.mxu0 0.0
    %1012 = vmatpush.xpose.msra.mxu0 0.0
    %1013 = vmatpush.xpose.msra.mxu0 0.0
    %1014 = vmatpush.xpose.msra.mxu0 %v997
    %1015 = vmatmul.f32.gmra.mxu0 %v995
    %v1016 = vpop.f32.mrf.mxu0
    %v1017 = vadd.f32 %v244, %v1016
    %1018 = vdwg.mxu0
    %v1019 = vsel %vm311, %v1017, -inf
    %1020 = vmax.xlane.f32.xlu0 %v1019
    %v1021 = vpop.xlane.xlu0 %1020
    %v1022 = vsub.f32 %v1017, %v1021
    %v1023 = vmul.f32 %v1022, 1.442695
    %v1024 = vpow.pop %v1023
    %v1025 = vsel %vm311, %v1024, 0.0
    %1026 = vadd.xlane.f32.xlu0 %v1025
    %v1027 = vpop.xlane.xlu0 %1026
    %v1028 = vrcp.pop %v1027
    %v1029 = vmul.f32 %v1024, %v1028
    %1030 = vrot.lane.b32.xlu0 %v856, 64
    %v1031 = vpop.permute.xlu0 %1030
    %v1034 = vsel %vm311, %v1029, 0
    %1036 = vmatpush.msra.mxu0 0.0
    %1037 = vmatpush.msra.mxu0 0.0
    %1038 = vmatpush.msra.mxu0 0.0
    %1039 = vmatpush.msra.mxu0 0.0
    %1040 = vmatpush.msra.mxu0 0.0
    %1041 = vmatpush.msra.mxu0 0.0
    %1042 = vmatpush.msra.mxu0 0.0
    %1043 = vmatpush.msra.mxu0 0.0
    %1044 = vmatpush.msra.mxu0 0.0
    %1045 = vmatpush.msra.mxu0 0.0
    %1046 = vmatpush.msra.mxu0 0.0
    %1047 = vmatpush.msra.mxu0 0.0
    %1048 = vmatpush.msra.mxu0 0.0
    %1049 = vmatpush.msra.mxu0 0.0
    %1050 = vmatpush.msra.mxu0 0.0
    %1051 = vmatpush.msra.mxu0 %v1031
    %1052 = vmatmul.f32.gmra.mxu0 %v1034
    %v1053 = vpop.f32.mrf.mxu0
    %v1054 = vadd.f32 0.0, %v1053
    %1055 = vdwg.mxu0
    %1056 = vrot.lane.b32.xlu0 %v856, 112
    %v1057 = vpop.permute.xlu0 %1056
    %1058 = vrot.lane.b32.xlu0 %v856, 80
    %v1059 = vpop.permute.xlu0 %1058
    %v1060 = vsel %vm286, %v1057, 0
    %v1062 = vsel %vm286, %v1059, 0
    %1064 = vmatpush.xpose.msra.mxu0 0.0
    %1065 = vmatpush.xpose.msra.mxu0 0.0
    %1066 = vmatpush.xpose.msra.mxu0 0.0
    %1067 = vmatpush.xpose.msra.mxu0 0.0
    %1068 = vmatpush.xpose.msra.mxu0 0.0
    %1069 = vmatpush.xpose.msra.mxu0 0.0
    %1070 = vmatpush.xpose.msra.mxu0 0.0
    %1071 = vmatpush.xpose.msra.mxu0 0.0
    %1072 = vmatpush.xpose.msra.mxu0 0.0
    %1073 = vmatpush.xpose.msra.mxu0 0.0
    %1074 = vmatpush.xpose.msra.mxu0 0.0
    %1075 = vmatpush.xpose.msra.mxu0 0.0
    %1076 = vmatpush.xpose.msra.mxu0 0.0
    %1077 = vmatpush.xpose.msra.mxu0 0.0
    %1078 = vmatpush.xpose.msra.mxu0 0.0
    %1079 = vmatpush.xpose.msra.mxu0 %v1062
    %1080 = vmatmul.f32.gmra.mxu0 %v1060
    %v1081 = vpop.f32.mrf.mxu0
    %v1082 = vadd.f32 %v244, %v1081
    %1083 = vdwg.mxu0
    %v1084 = vsel %vm311, %v1082, -inf
    %1085 = vmax.xlane.f32.xlu0 %v1084
    %v1086 = vpop.xlane.xlu0 %1085
    %v1087 = vsub.f32 %v1082, %v1086
    %v1088 = vmul.f32 %v1087, 1.442695
    %v1089 = vpow.pop %v1088
    %v1090 = vsel %vm311, %v1089, 0.0
    %1091 = vadd.xlane.f32.xlu0 %v1090
    %v1092 = vpop.xlane.xlu0 %1091
    %v1093 = vrcp.pop %v1092
    %v1094 = vmul.f32 %v1089, %v1093
    %1095 = vrot.lane.b32.xlu0 %v856, 48
    %v1096 = vpop.permute.xlu0 %1095
    %v1099 = vsel %vm311, %v1094, 0
    %1101 = vmatpush.msra.mxu0 0.0
    %1102 = vmatpush.msra.mxu0 0.0
    %1103 = vmatpush.msra.mxu0 0.0
    %1104 = vmatpush.msra.mxu0 0.0
    %1105 = vmatpush.msra.mxu0 0.0
    %1106 = vmatpush.msra.mxu0 0.0
    %1107 = vmatpush.msra.mxu0 0.0
    %1108 = vmatpush.msra.mxu0 0.0
    %1109 = vmatpush.msra.mxu0 0.0
    %1110 = vmatpush.msra.mxu0 0.0
    %1111 = vmatpush.msra.mxu0 0.0
    %1112 = vmatpush.msra.mxu0 0.0
    %1113 = vmatpush.msra.mxu0 0.0
    %1114 = vmatpush.msra.mxu0 0.0
    %1115 = vmatpush.msra.mxu0 0.0
    %1116 = vmatpush.msra.mxu0 %v1096
    %1117 = vmatmul.f32.gmra.mxu0 %v1099
    %v1118 = vpop.f32.mrf.mxu0
    %v1119 = vadd.f32 0.0, %v1118
    %1120 = vdwg.mxu0
    %1122 = vrot.lane.b32.xlu0 %v1119, 16
    %v1123 = vpop.permute.xlu0 %1122
    %v1125 = vsel %vm286, %v1054, %v1123
    %v1126 = vpack.c.bf16 %v1125, %v991
    %s1127 = scalar_lea.vmem %s9, 16
    %v1128 = vld [vmem:[%s1127] sm:$0xf]
    %v1129 = vld [vmem:[%s1127 + $0x4] sm:$0xf]
    %v1130 = vld [vmem:[%s1127 + $0x8] sm:$0xf]
    %v1131 = vld [vmem:[%s1127 + $0xc] sm:$0xf]
    %s1132 = scalar_lea.vmem %s10, 1
    %v1133 = vld [vmem:[%s1132] sm:$0x1]
    %v1135 = vperm.slane %v1133, 0
    %v1141 = vunpack.c.l.b16 %v1128
    %v1142 = vunpack.c.l.b16 %v1129
    %v1143 = vunpack.c.l.b16 %v1130
    %v1144 = vunpack.c.l.b16 %v1131
    %v1145 = vpack.c.b16 %v1142, %v1141
    %v1146 = vpack.c.b16 %v1144, %v1143
    %v1150 = vsel %vm178, %v1126, 0
    %1152 = vmatpush.bf16.msra.mxu0 0
    %1153 = vmatpush.bf16.msra.mxu0 0
    %1154 = vmatpush.bf16.msra.mxu0 0
    %1155 = vmatpush.bf16.msra.mxu0 0
    %1156 = vmatpush.bf16.msra.mxu0 0
    %1157 = vmatpush.bf16.msra.mxu0 0
    %1158 = vmatpush.bf16.msra.mxu0 %v1146
    %1159 = vmatpush.bf16.msra.mxu0 %v1145
    %1160 = vmatmul.bf16.gmra.mxu0 %v1150
    %v1161 = vpop.f32.mrf.mxu0
    %v1162 = vadd.f32 %v1135, %v1161
    %v1163 = vpop.f32.mrf.mxu0
    %v1164 = vadd.f32 %v1135, %v1163
    %1165 = vdwg.mxu0
    %v1166 = vadd.f32 %v816, %v1162
    %v1167 = vadd.f32 %v817, %v1164
    %s1168 = scalar_lea.vmem %s11, 1
    %v1169 = vld [vmem:[%s1168] sm:$0x1]
    %s1170 = scalar_lea.vmem %s12, 1
    %v1171 = vld [vmem:[%s1170] sm:$0x1]
    %v1172 = vsel %vm178, %v1166, 0.0
    %1173 = vadd.xlane.f32.xlu0 %v1172
    %v1174 = vpop.xlane.xlu0 %1173
    %v1175 = vsel %vm178, %v1167, 0.0
    %1176 = vadd.xlane.f32.xlu0 %v1175
    %v1177 = vpop.xlane.xlu0 %1176
    %v1178 = vmul.f32 %v1174, %v191
    %v1179 = vmul.f32 %v1177, %v191
    %v1180 = vsub.f32 %v1166, %v1178
    %v1181 = vsub.f32 %v1167, %v1179
    %v1182 = vmul.f32 %v1180, %v1180
    %v1183 = vmul.f32 %v1181, %v1181
    %v1184 = vsel %vm178, %v1182, 0.0
    %1185 = vadd.xlane.f32.xlu0 %v1184
    %v1186 = vpop.xlane.xlu0 %1185
    %v1187 = vsel %vm178, %v1183, 0.0
    %1188 = vadd.xlane.f32.xlu0 %v1187
    %v1189 = vpop.xlane.xlu0 %1188
    %v1190 = vmul.f32 %v1186, %v191
    %v1191 = vmul.f32 %v1189, %v191
    %v1192 = vadd.f32 %v1190, 1e-12
    %v1193 = vadd.f32 %v1191, 1e-12
    %v1194 = vrsqrt.pop %v1192
    %v1195 = vmul.f32 %v1194, %v1192
    %v1196 = vmul.f32 %v1195, %v1194
    %v1197 = vmul.f32 0.5, %v1196
    %v1198 = vsub.f32 1.5, %v1197
    %v1199 = vmul.f32 %v1194, %v1198
    %vm1200 = vweird.f32 %v1192
    %vm1201 = vweird.f32 %v1194
    %vm1202 = vmor %vm1200, %vm1201
    %v1203 = vsel %vm1202, %v1194, %v1199
    %v1204 = vrsqrt.pop %v1193
    %v1205 = vmul.f32 %v1204, %v1193
    %v1206 = vmul.f32 %v1205, %v1204
    %v1207 = vmul.f32 0.5, %v1206
    %v1208 = vsub.f32 1.5, %v1207
    %v1209 = vmul.f32 %v1204, %v1208
    %vm1210 = vweird.f32 %v1193
    %vm1211 = vweird.f32 %v1204
    %vm1212 = vmor %vm1210, %vm1211
    %v1213 = vsel %vm1212, %v1204, %v1209
    %v1214 = vmul.f32 %v1180, %v1203
    %v1215 = vmul.f32 %v1181, %v1213
    %v1217 = vperm.slane %v1169, 0
    %v1219 = vmul.f32 %v1214, %v1217
    %v1220 = vmul.f32 %v1215, %v1217
    %v1222 = vperm.slane %v1171, 0
    %v1224 = vadd.f32 %v1219, %v1222
    %v1225 = vadd.f32 %v1220, %v1222
    %v1226 = vpack.c.bf16 %v1225, %v1224
    %s1227 = scalar_lea.vmem %s13, 16
    %v1228 = vld [vmem:[%s1227] sm:$0xf]
    %v1229 = vld [vmem:[%s1227 + $0x4] sm:$0xf]
    %v1230 = vld [vmem:[%s1227 + $0x8] sm:$0xf]
    %v1231 = vld [vmem:[%s1227 + $0xc] sm:$0xf]
    %s1232 = scalar_lea.vmem %s14, 1
    %v1233 = vld [vmem:[%s1232] sm:$0x1]
    %v1235 = vperm.slane %v1233, 0
    %v1241 = vunpack.c.l.b16 %v1228
    %v1242 = vunpack.c.l.b16 %v1229
    %v1243 = vunpack.c.l.b16 %v1230
    %v1244 = vunpack.c.l.b16 %v1231
    %v1245 = vpack.c.b16 %v1242, %v1241
    %v1246 = vpack.c.b16 %v1244, %v1243
    %v1250 = vsel %vm178, %v1226, 0
    %1252 = vmatpush.bf16.msra.mxu0 0
    %1253 = vmatpush.bf16.msra.mxu0 0
    %1254 = vmatpush.bf16.msra.mxu0 0
    %1255 = vmatpush.bf16.msra.mxu0 0
    %1256 = vmatpush.bf16.msra.mxu0 0
    %1257 = vmatpush.bf16.msra.mxu0 0
    %1258 = vmatpush.bf16.msra.mxu0 %v1246
    %1259 = vmatpush.bf16.msra.mxu0 %v1245
    %1260 = vmatmul.bf16.gmra.mxu0 %v1250
    %v1261 = vpop.f32.mrf.mxu0
    %v1262 = vadd.f32 %v1235, %v1261
    %v1263 = vpop.f32.mrf.mxu0
    %v1264 = vadd.f32 %v1235, %v1263
    %1265 = vdwg.mxu0
    %v1266 = vmul.f32 %v1262, 0.5
    %v1267 = vmul.f32 %v1264, 0.5
    %v1268 = vmul.f32 %v1262, 0.044715
    %v1269 = vmul.f32 %v1264, 0.044715
    %v1270 = vmul.f32 %v1268, %v1262
    %v1271 = vmul.f32 %v1269, %v1264
    %v1272 = vmul.f32 %v1270, %v1262
    %v1273 = vmul.f32 %v1271, %v1264
    %v1274 = vadd.f32 %v1262, %v1272
    %v1275 = vadd.f32 %v1264, %v1273
    %v1276 = vmul.f32 %v1274, 0.7978846
    %v1277 = vmul.f32 %v1275, 0.7978846
    %v1278 = vtanh.pop %v1276
    %v1279 = vtanh.pop %v1277
    %v1280 = vadd.f32 %v1278, 1.0
    %v1281 = vadd.f32 %v1279, 1.0
    %v1282 = vmul.f32 %v1266, %v1280
    %v1283 = vmul.f32 %v1267, %v1281
    %v1284 = vpack.c.bf16 %v1283, %v1282
    %s1285 = scalar_lea.vmem %s15, 32
    %v1286 = vld [vmem:[%s1285] sm:$0xf]
    %v1287 = vld [vmem:[%s1285 + $0x4] sm:$0xf]
    %v1288 = vld [vmem:[%s1285 + $0x8] sm:$0xf]
    %v1289 = vld [vmem:[%s1285 + $0xc] sm:$0xf]
    %v1290 = vld [vmem:[%s1285 + $0x10] sm:$0xf]
    %v1291 = vld [vmem:[%s1285 + $0x14] sm:$0xf]
    %v1292 = vld [vmem:[%s1285 + $0x18] sm:$0xf]
    %v1293 = vld [vmem:[%s1285 + $0x1c] sm:$0xf]
    %s1294 = scalar_lea.vmem %s16, 1
    %v1295 = vld [vmem:[%s1294] sm:$0x1]
    %v1297 = vperm.slane %v1295, 0
    %v1307 = vunpack.c.l.b16 %v1286
    %v1308 = vunpack.c.l.b16 %v1287
    %v1309 = vunpack.c.l.b16 %v1288
    %v1310 = vunpack.c.l.b16 %v1289
    %v1311 = vunpack.c.l.b16 %v1290
    %v1312 = vunpack.c.l.b16 %v1291
    %v1313 = vunpack.c.l.b16 %v1292
    %v1314 = vunpack.c.l.b16 %v1293
    %v1315 = vpack.c.b16 %v1308, %v1307
    %v1316 = vpack.c.b16 %v1310, %v1309
    %v1317 = vpack.c.b16 %v1312, %v1311
    %v1318 = vpack.c.b16 %v1314, %v1313
    %v1324 = vsel %vm742, %v1284, 0
    %1326 = vmatpush.bf16.msra.mxu0 0
    %1327 = vmatpush.bf16.msra.mxu0 0
    %1328 = vmatpush.bf16.msra.mxu0 0
    %1329 = vmatpush.bf16.msra.mxu0 0
    %1330 = vmatpush.bf16.msra.mxu0 %v1318
    %1331 = vmatpush.bf16.msra.mxu0 %v1317
    %1332 = vmatpush.bf16.msra.mxu0 %v1316
    %1333 = vmatpush.bf16.msra.mxu0 %v1315
    %1334 = vmatmul.bf16.gmra.mxu0 %v1324
    %v1335 = vpop.f32.mrf.mxu0
    %v1336 = vadd.f32 %v1297, %v1335
    %v1337 = vpop.f32.mrf.mxu0
    %v1338 = vadd.f32 %v1297, %v1337
    %1339 = vdwg.mxu0
    %v1340 = vadd.f32 %v1224, %v1336
    %v1341 = vadd.f32 %v1225, %v1338
    %s1342 = scalar_lea.vmem %s17, 1
    %v1343 = vld [vmem:[%s1342] sm:$0x1]
    %s1344 = scalar_lea.vmem %s18, 1
    %v1345 = vld [vmem:[%s1344] sm:$0x1]
    %v1346 = vsel %vm178, %v1340, 0.0
    %1347 = vadd.xlane.f32.xlu0 %v1346
    %v1348 = vpop.xlane.xlu0 %1347
    %v1349 = vsel %vm178, %v1341, 0.0
    %1350 = vadd.xlane.f32.xlu0 %v1349
    %v1351 = vpop.xlane.xlu0 %1350
    %v1352 = vmul.f32 %v1348, %v191
    %v1353 = vmul.f32 %v1351, %v191
    %v1354 = vsub.f32 %v1340, %v1352
    %v1355 = vsub.f32 %v1341, %v1353
    %v1356 = vmul.f32 %v1354, %v1354
    %v1357 = vmul.f32 %v1355, %v1355
    %v1358 = vsel %vm178, %v1356, 0.0
    %1359 = vadd.xlane.f32.xlu0 %v1358
    %v1360 = vpop.xlane.xlu0 %1359
    %v1361 = vsel %vm178, %v1357, 0.0
    %1362 = vadd.xlane.f32.xlu0 %v1361
    %v1363 = vpop.xlane.xlu0 %1362
    %v1364 = vmul.f32 %v1360, %v191
    %v1365 = vmul.f32 %v1363, %v191
    %v1366 = vadd.f32 %v1364, 1e-12
    %v1367 = vadd.f32 %v1365, 1e-12
    %v1368 = vrsqrt.pop %v1366
    %v1369 = vmul.f32 %v1368, %v1366
    %v1370 = vmul.f32 %v1369, %v1368
    %v1371 = vmul.f32 0.5, %v1370
    %v1372 = vsub.f32 1.5, %v1371
    %v1373 = vmul.f32 %v1368, %v1372
    %vm1374 = vweird.f32 %v1366
    %vm1375 = vweird.f32 %v1368
    %vm1376 = vmor %vm1374, %vm1375
    %v1377 = vsel %vm1376, %v1368, %v1373
    %v1378 = vrsqrt.pop %v1367
    %v1379 = vmul.f32 %v1378, %v1367
    %v1380 = vmul.f32 %v1379, %v1378
    %v1381 = vmul.f32 0.5, %v1380
    %v1382 = vsub.f32 1.5, %v1381
    %v1383 = vmul.f32 %v1378, %v1382
    %vm1384 = vweird.f32 %v1367
    %vm1385 = vweird.f32 %v1378
    %vm1386 = vmor %vm1384, %vm1385
    %v1387 = vsel %vm1386, %v1378, %v1383
    %v1388 = vmul.f32 %v1354, %v1377
    %v1389 = vmul.f32 %v1355, %v1387
    %v1391 = vperm.slane %v1343, 0
    %v1393 = vmul.f32 %v1388, %v1391
    %v1394 = vmul.f32 %v1389, %v1391
    %v1396 = vperm.slane %v1345, 0
    %v1398 = vadd.f32 %v1393, %v1396
    %v1399 = vadd.f32 %v1394, %v1396
    %v1401 = vrot.slane %v1399, 7
    %vm1403 = vcmask 1040384
    %v1404 = vsel %vm1403, %v1398, %v1401
    %v1405 = vpack.c.bf16 %v1404, %v1404
    %v1406 = vld [vmem:[%s19] sm:$0xf]
    %v1407 = vld [vmem:[%s19 + $0x4] sm:$0xf]
    %v1408 = vld [vmem:[%s19 + $0x8] sm:$0xf]
    %v1409 = vld [vmem:[%s19 + $0xc] sm:$0xf]
    %v1410 = vld [vmem:[%s20] sm:$0x1]
    %v1412 = vperm.slane %v1410, 0
    %v1418 = vunpack.c.l.b16 %v1406
    %v1419 = vunpack.c.l.b16 %v1407
    %v1420 = vunpack.c.l.b16 %v1408
    %v1421 = vunpack.c.l.b16 %v1409
    %v1422 = vpack.c.b16 %v1419, %v1418
    %v1423 = vpack.c.b16 %v1421, %v1420
    %v1427 = vsel %vm178, %v1405, 0
    %1429 = vmatpush.bf16.msra.mxu0 0
    %1430 = vmatpush.bf16.msra.mxu0 0
    %1431 = vmatpush.bf16.msra.mxu0 0
    %1432 = vmatpush.bf16.msra.mxu0 0
    %1433 = vmatpush.bf16.msra.mxu0 0
    %1434 = vmatpush.bf16.msra.mxu0 0
    %1435 = vmatpush.bf16.msra.mxu0 %v1423
    %1436 = vmatpush.bf16.msra.mxu0 %v1422
    %1437 = vmatmul.bf16.gmra.mxu0 %v1427
    %v1438 = vpop.f32.mrf.mxu0
    %v1439 = vadd.f32 %v1412, %v1438
    %v1440 = vpop.f32.mrf.mxu0
    %1441 = vdwg.mxu0
    %v1442 = vtanh.pop %v1439
    %v1443 = vpack.c.bf16 %v1442, %v1442
    %v1444 = vld [vmem:[%s21] sm:$0xf]
    %v1445 = vld [vmem:[%s21 + $0x4] sm:$0xf]
    %v1446 = vld [vmem:[%s21 + $0x8] sm:$0xf]
    %v1447 = vld [vmem:[%s21 + $0xc] sm:$0xf]
    %v1448 = vld [vmem:[%s22] sm:$0x1]
    %v1450 = vperm.slane %v1448, 0
    %v1456 = vunpack.c.l.b16 %v1444
    %v1457 = vunpack.c.l.b16 %v1445
    %v1458 = vunpack.c.l.b16 %v1446
    %v1459 = vunpack.c.l.b16 %v1447
    %v1460 = vpack.c.b16 %v1457, %v1456
    %v1461 = vpack.c.b16 %v1459, %v1458
    %v1465 = vsel %vm178, %v1443, 0
    %1467 = vmatpush.bf16.msra.mxu0 0
    %1468 = vmatpush.bf16.msra.mxu0 0
    %1469 = vmatpush.bf16.msra.mxu0 0
    %1470 = vmatpush.bf16.msra.mxu0 0
    %1471 = vmatpush.bf16.msra.mxu0 0
    %1472 = vmatpush.bf16.msra.mxu0 0
    %1473 = vmatpush.bf16.msra.mxu0 %v1461
    %1474 = vmatpush.bf16.msra.mxu0 %v1460
    %1475 = vmatmul.bf16.gmra.mxu0 %v1465
    %v1476 = vpop.f32.mrf.mxu0
    %v1477 = vadd.f32 %v1450, %v1476
    %v1478 = vpop.f32.mrf.mxu0
    %1479 = vdwg.mxu0
    %vm1480 = vcmask 1041408
    %v1481 = vsel %vm1480, %v1477, -inf
    %1482 = vmax.xlane.f32.xlu0 %v1481
    %v1483 = vpop.xlane.xlu0 %1482
    %v1484 = vsub.f32 %v1477, %v1483
    %v1485 = vmul.f32 %v1484, 1.442695
    %v1486 = vpow.pop %v1485
    %v1487 = vsel %vm1480, %v1486, 0.0
    %1488 = vadd.xlane.f32.xlu0 %v1487
    %v1489 = vpop.xlane.xlu0 %1488
    %v1490 = vrcp.pop %v1489
    %v1491 = vmul.f32 %v1489, %v1490
    %v1492 = vsub.f32 1.0, %v1491
    %v1493 = vmul.f32 %v1490, %v1492
    %v1494 = vadd.f32 %v1490, %v1493
    %vm1495 = vweird.f32 %v1489
    %vm1496 = vweird.f32 %v1490
    %vm1497 = vmor %vm1495, %vm1496
    %v1498 = vsel %vm1497, %v1490, %v1494
    %v1499 = vand.u32 2147483647, %v1489
    %vm1500 = vcmp.eq.f32.partialorder %v1499, 8.507059e+37
    %v1501 = vand.u32 %v1489, 2147483648
    %v1502 = vor.u32 1.1754944e-38, %v1501
    %v1503 = vsel %vm1500, %v1502, %v1498
    %v1504 = vmul.f32 %v1486, %v1503
    %1505 = vst [vmem:[#allocation2] sm:$0x3] %v1504
    // Predicated region
    $region94: #{bert_sentiment_classifier.1} parent=1 // pred_check
      _
    $region95: #{bert_sentiment_classifier.1} parent=1 // pred_check_branch
      %1507 = sbr.rel (0) target = $region97
    $region96: #{bert_sentiment_classifier.1} parent=1 // pred_region
      %1509 = vsyncadd [#allocation3], 0
      %s1511 = sshll.u32 [#allocation2], 4
      %s1512 = int_to_ptr.vmem [resolvable:$true] %s1511
      %s1513 = sshll.u32 %s23, 4
      %s1514 = int_to_ptr.hbm [resolvable:$true] %s1513
      %1516 = dma.vmem_to_hbm [thread:$0]  %s1512, 32, %s1514, [#allocation3]
    $region97: #{bert_sentiment_classifier.1} parent=1 // pred_fallthru
      _
    // Predicated region
    $region98: #{bert_sentiment_classifier.1} parent=1 // pred_check
      _
    $region99: #{bert_sentiment_classifier.1} parent=1 // pred_check_branch
      %1518 = sbr.rel (0) target = $region101
    $region100: #{bert_sentiment_classifier.1} parent=1 // pred_region
      %1520 = dma.done [#allocation3], 32
    $region101: #{bert_sentiment_classifier.1} parent=1 // pred_fallthru
      _
    %1521 = vsyncpa [#allocation3], 1

</llo_original>
